<compile_context>
chip_gen: v6e
topology: v6e:2x2x1
jax: 0.10.0
libtpu: 0.0.40
codegen_flags: <defaults>
</compile_context>

<pallas_src>
import numpy as np

import jax
import jax.numpy as jnp
from jax import lax
from jax.experimental import pallas as pl
from jax.experimental.pallas import tpu as pltpu


def _transition_down_kernel(x_ref, w_ref, b_ref, o_ref):
    # x_ref : (1, Cin, 2*td, tho, 2*W)  VMEM; lanes = (h-parity, w), sublanes = tho
    # w_ref : (Cout, Cin)  SMEM         1x1x1 conv weight with BN scale folded in
    # b_ref : (Cout,)      SMEM         fused BN bias
    # o_ref : (1, Cout, td, tho, Wo)    pooled output block
    _, cin, _, tho, w2 = x_ref.shape
    W = w2 // 2
    cout, td, wo = o_ref.shape[1], o_ref.shape[2], o_ref.shape[4]

    # Hoist channel loads (+ f32 casts) out of the per-output-channel loop.
    xs = [x_ref[0, ci].astype(jnp.float32) for ci in range(cin)]   # (2*td, tho, 2*W)

    # TODO(synk): for deeper CostRegNet stages with C >= 16, do the Cin
    # contraction as a single MXU dot_general instead of the unrolled
    # scalar-broadcast FMAs below.
    zhs = []
    for co in range(cout):
        # ---- 1x1x1 conv + fused BatchNorm(eval) + ReLU (VPU) ---------------
        acc = w_ref[co, 0] * xs[0]
        for ci in range(1, cin):
            acc = acc + w_ref[co, ci] * xs[ci]
        y = jnp.maximum(acc + b_ref[co], 0.0)            # (2*td, tho, 2*W)
        # TODO(synk): nn.Dropout3d(0.2) is identity in eval mode; training-mode
        # channelwise dropout with PyTorch RNG semantics is not reproduced.

        # ---- MaxPool3d(2): exact pairwise maxes on VPU/XLU ------------------
        y = y.reshape(td, 2, tho, w2)                    # split depth pairs (leading dims only)
        zd = jnp.maximum(y[:, 0], y[:, 1])               # depth pair -> (td, tho, 2*W)
        zd = zd.reshape(td * tho, w2)                    # tile-aligned leading merge
        zr = pltpu.roll(zd, shift=W, axis=1)             # bring h-parity-1 half to lanes [0, W)
        zh = jnp.maximum(zd[:, :W], zr[:, :W])           # h pair -> (td*tho, W)
        zhs.append(zh)

    # ---- w pair + lane compaction, batched over all channels ----------------
    # Two tiny (W, Wo) 0/1 tap selectors built in-kernel (no DMA'd constants,
    # no double-buffering), single matmul pair with M = Cout*td*tho, then the
    # exact max of the two taps, and ONE store.
    z = jnp.concatenate(zhs, axis=0)                     # (Cout*td*tho, W)
    r = lax.broadcasted_iota(jnp.int32, (W, wo), 0)
    c = lax.broadcasted_iota(jnp.int32, (W, wo), 1)
    sel_even = (r == 2 * c).astype(jnp.float32)
    sel_odd = (r == 2 * c + 1).astype(jnp.float32)
    p = jnp.maximum(
        jnp.dot(z, sel_even, preferred_element_type=jnp.float32),
        jnp.dot(z, sel_odd, preferred_element_type=jnp.float32))   # (Cout*td*tho, Wo)
    o_ref[0] = p.reshape(cout, td, tho, wo).astype(o_ref.dtype)


def _divisors(n):
    return [d for d in range(1, n + 1) if n % d == 0]


def _pick_tiles(Do, Ho, bytes_per_unit, budget):
    """Pick (td, tho): td any divisor of Do (leading dim, no 8/128 constraint);
    tho a multiple-of-8 divisor of Ho (or Ho itself).  Largest product whose
    per-step input block stays under `budget` bytes (double-buffered by Pallas)."""
    ho_opts = [d for d in _divisors(Ho) if d % 8 == 0] or [Ho]
    best_td, best_tho = 1, ho_opts[0]
    for tho in ho_opts:
        for td in _divisors(Do):
            if td * tho * bytes_per_unit <= budget and td * tho > best_td * best_tho:
                best_td, best_tho = td, tho
    return best_td, best_tho


def transition_down(x, weight, bn_gamma, bn_beta, bn_mean, bn_var, eps=1e-5):
    """TransitionDown forward: 1x1x1 Conv3d(bias=False) + BatchNorm3d(eval) + ReLU
    + Dropout3d (identity in eval) + MaxPool3d(2), as one fused Pallas kernel.

    x      : (N, Cin, D, H, W), PyTorch NCDHW layout (f32 or bf16)
    weight : (Cout, Cin)  (the (Cout, Cin, 1, 1, 1) PyTorch kernel, squeezed)
    returns: (N, Cout, D//2, H//2, W//2)
    """
    N, Cin, D, H, W = x.shape
    Cout = weight.shape[0]
    assert D % 2 == 0 and H % 2 == 0 and W % 2 == 0, "MaxPool3d(2): even dims expected"
    Do, Ho, Wo = D // 2, H // 2, W // 2

    # Fold BatchNorm (eval) into the conv: y = relu(w_f @ x + b_f).
    scale = bn_gamma / jnp.sqrt(bn_var + eps)
    w_f = (weight * scale[:, None]).astype(jnp.float32)            # (Cout, Cin)
    b_f = (bn_beta - bn_mean * scale).astype(jnp.float32)          # (Cout,)

    # Depth / row tiling (no halo needed for a 1x1x1 conv).  ~4 MiB per input
    # buffer keeps the double-buffered slab well inside v7x's 64 MiB VMEM; on
    # v5e/v6e the budget (and vmem_limit_bytes below) can be raised ~2x.
    bytes_per_unit = Cin * 2 * (2 * W) * x.dtype.itemsize          # td=1, tho=1 cell
    td, tho = _pick_tiles(Do, Ho, bytes_per_unit, budget=4 << 20)

    # Zero-copy layout: (N, Cin, D, H, W) -> (N, Cin, D, Ho, 2*W); the trailing
    # lane dim holds (h-parity, w) so the h pair is a half-lane split.
    x_r = x.reshape(N, Cin, D, Ho, 2 * W)

    out = pl.pallas_call(
        _transition_down_kernel,
        out_shape=jax.ShapeDtypeStruct((N, Cout, Do, Ho, Wo), x.dtype),
        grid_spec=pltpu.PrefetchScalarGridSpec(
            num_scalar_prefetch=0,
            grid=(N, Do // td, Ho // tho),
            in_specs=[
                pl.BlockSpec((1, Cin, 2 * td, tho, 2 * W),
                             lambda n, i, j: (n, 0, i, j, 0)),
                pl.BlockSpec(memory_space=pltpu.MemorySpace.SMEM),
                pl.BlockSpec(memory_space=pltpu.MemorySpace.SMEM),
            ],
            out_specs=pl.BlockSpec((1, Cout, td, tho, Wo),
                                   lambda n, i, j: (n, 0, i, j, 0)),
        ),
        compiler_params=pltpu.CompilerParams(
            dimension_semantics=("parallel", "parallel", "parallel"),
            vmem_limit_bytes=32 * 1024 * 1024),
    )(x_r, w_f, b_f)

    # Output is already (N, Cout, Do, Ho, Wo) — no wrapper reshape / copy.
    # TODO(synk): output lane width is Wo (<128); a lane-dense (td*Ho*Wo) store
    # layout would need an in-kernel sublane->lane relayout, skipped here.
    return out


def _ref_transition_down(x, weight, bn_gamma, bn_beta, bn_mean, bn_var, eps=1e-5):
    """Pure-JAX reference (broadcast-sum conv, reshape-max pooling)."""
    scale = bn_gamma / jnp.sqrt(bn_var + eps)
    w_f = weight * scale[:, None]
    b_f = bn_beta - bn_mean * scale
    y = jnp.sum(w_f[None, :, :, None, None, None] * x[:, None, :, :, :, :], axis=2)
    y = jnp.maximum(y + b_f[None, :, None, None, None], 0.0)
    N, C, D, H, W = y.shape
    y = y.reshape(N, C, D // 2, 2, H // 2, 2, W // 2, 2)
    return y.max(axis=(3, 5, 7))


if __name__ == "__main__":
    N, C, D, H, W = 2, 4, 16, 16, 16   # TransitionDown keeps C, halves D/H/W

    key = jax.random.PRNGKey(0)
    kx, kw, kg, kb, km, kv = jax.random.split(key, 6)
    x = jax.random.normal(kx, (N, C, D, H, W), jnp.float32)
    weight = jax.random.normal(kw, (C, C), jnp.float32) / np.sqrt(C)
    bn_gamma = 1.0 + 0.1 * jax.random.normal(kg, (C,), jnp.float32)
    bn_beta = 0.1 * jax.random.normal(kb, (C,), jnp.float32)
    bn_mean = 0.05 * jax.random.normal(km, (C,), jnp.float32)
    bn_var = 1.0 + 0.1 * jax.random.uniform(kv, (C,), jnp.float32)

    out = transition_down(x, weight, bn_gamma, bn_beta, bn_mean, bn_var)
    out = jax.block_until_ready(out)
    assert out.shape == (N, C, D // 2, H // 2, W // 2)

    ref = _ref_transition_down(x, weight, bn_gamma, bn_beta, bn_mean, bn_var)
    # The window max itself is exact (VPU); the only possible divergence is the
    # final (W, Wo) tap-selector pass through the MXU, which may round the
    # selected value to ~bf16 precision (rel err <= 2^-9), plus f32 FMA-order
    # differences in the conv.  Tolerance comfortably covers both.
    np.testing.assert_allclose(np.asarray(out), np.asarray(ref),
                               rtol=1e-2, atol=1e-5)

    print("KERNEL_OK")
</pallas_src>

<mosaic_0001>
module attributes {stable_mosaic.version = 11 : i64} {
  func.func @_transition_down_kernel(%arg0: i32, %arg1: i32, %arg2: i32, %arg3: memref<1x4x16x8x32xf32, #tpu.memory_space<vmem>>, %arg4: memref<4x4xf32, #tpu.memory_space<smem>>, %arg5: memref<4xf32, #tpu.memory_space<smem>>, %arg6: memref<1x4x8x8x8xf32, #tpu.memory_space<vmem>>) attributes {dimension_semantics = [#tpu.dimension_semantics<parallel>, #tpu.dimension_semantics<parallel>, #tpu.dimension_semantics<parallel>], iteration_bounds = array<i64: 2, 1, 1>, scalar_prefetch = 0 : i64, scratch_operands = 0 : i64, tpu.core_type = #tpu.core_type<tc>, window_params = [{transform_indices = @transform_0, window_bounds = array<i64: 1, 4, 16, 8, 32>}, {transform_indices = @transform_1, window_bounds = array<i64: 4, 4>}, {transform_indices = @transform_2, window_bounds = array<i64: 4>}, {transform_indices = @transform_3, window_bounds = array<i64: 1, 4, 8, 8, 8>}]} {
    %c0 = arith.constant 0 : index
    %c0_0 = arith.constant 0 : index
    %c0_1 = arith.constant 0 : index
    %c0_2 = arith.constant 0 : index
    %c0_3 = arith.constant 0 : index
    %0 = vector.load %arg3[%c0, %c0_0, %c0_1, %c0_2, %c0_3] : memref<1x4x16x8x32xf32, #tpu.memory_space<vmem>>, vector<1x1x16x8x32xf32>
    %1 = vector.shape_cast %0 : vector<1x1x16x8x32xf32> to vector<16x8x32xf32>
    %c0_4 = arith.constant 0 : index
    %c1 = arith.constant 1 : index
    %c0_5 = arith.constant 0 : index
    %c0_6 = arith.constant 0 : index
    %c0_7 = arith.constant 0 : index
    %2 = vector.load %arg3[%c0_4, %c1, %c0_5, %c0_6, %c0_7] : memref<1x4x16x8x32xf32, #tpu.memory_space<vmem>>, vector<1x1x16x8x32xf32>
    %3 = vector.shape_cast %2 : vector<1x1x16x8x32xf32> to vector<16x8x32xf32>
    %c0_8 = arith.constant 0 : index
    %c2 = arith.constant 2 : index
    %c0_9 = arith.constant 0 : index
    %c0_10 = arith.constant 0 : index
    %c0_11 = arith.constant 0 : index
    %4 = vector.load %arg3[%c0_8, %c2, %c0_9, %c0_10, %c0_11] : memref<1x4x16x8x32xf32, #tpu.memory_space<vmem>>, vector<1x1x16x8x32xf32>
    %5 = vector.shape_cast %4 : vector<1x1x16x8x32xf32> to vector<16x8x32xf32>
    %c0_12 = arith.constant 0 : index
    %c3 = arith.constant 3 : index
    %c0_13 = arith.constant 0 : index
    %c0_14 = arith.constant 0 : index
    %c0_15 = arith.constant 0 : index
    %6 = vector.load %arg3[%c0_12, %c3, %c0_13, %c0_14, %c0_15] : memref<1x4x16x8x32xf32, #tpu.memory_space<vmem>>, vector<1x1x16x8x32xf32>
    %7 = vector.shape_cast %6 : vector<1x1x16x8x32xf32> to vector<16x8x32xf32>
    %c0_16 = arith.constant 0 : index
    %c0_17 = arith.constant 0 : index
    %8 = memref.load %arg4[%c0_16, %c0_17] : memref<4x4xf32, #tpu.memory_space<smem>>
    %9 = vector.broadcast %8 : f32 to vector<16x8x32xf32>
    %10 = arith.mulf %9, %1 : vector<16x8x32xf32>
    %c0_18 = arith.constant 0 : index
    %c1_19 = arith.constant 1 : index
    %11 = memref.load %arg4[%c0_18, %c1_19] : memref<4x4xf32, #tpu.memory_space<smem>>
    %12 = vector.broadcast %11 : f32 to vector<16x8x32xf32>
    %13 = arith.mulf %12, %3 : vector<16x8x32xf32>
    %14 = arith.addf %10, %13 : vector<16x8x32xf32>
    %c0_20 = arith.constant 0 : index
    %c2_21 = arith.constant 2 : index
    %15 = memref.load %arg4[%c0_20, %c2_21] : memref<4x4xf32, #tpu.memory_space<smem>>
    %16 = vector.broadcast %15 : f32 to vector<16x8x32xf32>
    %17 = arith.mulf %16, %5 : vector<16x8x32xf32>
    %18 = arith.addf %14, %17 : vector<16x8x32xf32>
    %c0_22 = arith.constant 0 : index
    %c3_23 = arith.constant 3 : index
    %19 = memref.load %arg4[%c0_22, %c3_23] : memref<4x4xf32, #tpu.memory_space<smem>>
    %20 = vector.broadcast %19 : f32 to vector<16x8x32xf32>
    %21 = arith.mulf %20, %7 : vector<16x8x32xf32>
    %22 = arith.addf %18, %21 : vector<16x8x32xf32>
    %c0_24 = arith.constant 0 : index
    %23 = memref.load %arg5[%c0_24] : memref<4xf32, #tpu.memory_space<smem>>
    %24 = vector.broadcast %23 : f32 to vector<16x8x32xf32>
    %25 = arith.addf %22, %24 : vector<16x8x32xf32>
    %cst = arith.constant 0.000000e+00 : f32
    %26 = vector.broadcast %cst : f32 to vector<16x8x32xf32>
    %27 = arith.maximumf %25, %26 : vector<16x8x32xf32>
    %28 = vector.shape_cast %27 : vector<16x8x32xf32> to vector<8x2x8x32xf32>
    %29 = vector.extract_strided_slice %28 {offsets = [0, 0, 0, 0], sizes = [8, 1, 8, 32], strides = [1, 1, 1, 1]} : vector<8x2x8x32xf32> to vector<8x1x8x32xf32>
    %30 = vector.shape_cast %29 : vector<8x1x8x32xf32> to vector<8x8x32xf32>
    %31 = vector.extract_strided_slice %28 {offsets = [0, 1, 0, 0], sizes = [8, 1, 8, 32], strides = [1, 1, 1, 1]} : vector<8x2x8x32xf32> to vector<8x1x8x32xf32>
    %32 = vector.shape_cast %31 : vector<8x1x8x32xf32> to vector<8x8x32xf32>
    %33 = arith.maximumf %30, %32 : vector<8x8x32xf32>
    %34 = vector.shape_cast %33 : vector<8x8x32xf32> to vector<64x32xf32>
    %c16_i32 = arith.constant 16 : i32
    %35 = tpu.dynamic_rotate %34 by %c16_i32 dim 1 : vector<64x32xf32>, i32 -> vector<64x32xf32>
    %36 = vector.extract_strided_slice %34 {offsets = [0, 0], sizes = [64, 16], strides = [1, 1]} : vector<64x32xf32> to vector<64x16xf32>
    %37 = vector.extract_strided_slice %35 {offsets = [0, 0], sizes = [64, 16], strides = [1, 1]} : vector<64x32xf32> to vector<64x16xf32>
    %38 = arith.maximumf %36, %37 : vector<64x16xf32>
    %c1_25 = arith.constant 1 : index
    %c0_26 = arith.constant 0 : index
    %39 = memref.load %arg4[%c1_25, %c0_26] : memref<4x4xf32, #tpu.memory_space<smem>>
    %40 = vector.broadcast %39 : f32 to vector<16x8x32xf32>
    %41 = arith.mulf %40, %1 : vector<16x8x32xf32>
    %c1_27 = arith.constant 1 : index
    %c1_28 = arith.constant 1 : index
    %42 = memref.load %arg4[%c1_27, %c1_28] : memref<4x4xf32, #tpu.memory_space<smem>>
    %43 = vector.broadcast %42 : f32 to vector<16x8x32xf32>
    %44 = arith.mulf %43, %3 : vector<16x8x32xf32>
    %45 = arith.addf %41, %44 : vector<16x8x32xf32>
    %c1_29 = arith.constant 1 : index
    %c2_30 = arith.constant 2 : index
    %46 = memref.load %arg4[%c1_29, %c2_30] : memref<4x4xf32, #tpu.memory_space<smem>>
    %47 = vector.broadcast %46 : f32 to vector<16x8x32xf32>
    %48 = arith.mulf %47, %5 : vector<16x8x32xf32>
    %49 = arith.addf %45, %48 : vector<16x8x32xf32>
    %c1_31 = arith.constant 1 : index
    %c3_32 = arith.constant 3 : index
    %50 = memref.load %arg4[%c1_31, %c3_32] : memref<4x4xf32, #tpu.memory_space<smem>>
    %51 = vector.broadcast %50 : f32 to vector<16x8x32xf32>
    %52 = arith.mulf %51, %7 : vector<16x8x32xf32>
    %53 = arith.addf %49, %52 : vector<16x8x32xf32>
    %c1_33 = arith.constant 1 : index
    %54 = memref.load %arg5[%c1_33] : memref<4xf32, #tpu.memory_space<smem>>
    %55 = vector.broadcast %54 : f32 to vector<16x8x32xf32>
    %56 = arith.addf %53, %55 : vector<16x8x32xf32>
    %cst_34 = arith.constant 0.000000e+00 : f32
    %57 = vector.broadcast %cst_34 : f32 to vector<16x8x32xf32>
    %58 = arith.maximumf %56, %57 : vector<16x8x32xf32>
    %59 = vector.shape_cast %58 : vector<16x8x32xf32> to vector<8x2x8x32xf32>
    %60 = vector.extract_strided_slice %59 {offsets = [0, 0, 0, 0], sizes = [8, 1, 8, 32], strides = [1, 1, 1, 1]} : vector<8x2x8x32xf32> to vector<8x1x8x32xf32>
    %61 = vector.shape_cast %60 : vector<8x1x8x32xf32> to vector<8x8x32xf32>
    %62 = vector.extract_strided_slice %59 {offsets = [0, 1, 0, 0], sizes = [8, 1, 8, 32], strides = [1, 1, 1, 1]} : vector<8x2x8x32xf32> to vector<8x1x8x32xf32>
    %63 = vector.shape_cast %62 : vector<8x1x8x32xf32> to vector<8x8x32xf32>
    %64 = arith.maximumf %61, %63 : vector<8x8x32xf32>
    %65 = vector.shape_cast %64 : vector<8x8x32xf32> to vector<64x32xf32>
    %c16_i32_35 = arith.constant 16 : i32
    %66 = tpu.dynamic_rotate %65 by %c16_i32_35 dim 1 : vector<64x32xf32>, i32 -> vector<64x32xf32>
    %67 = vector.extract_strided_slice %65 {offsets = [0, 0], sizes = [64, 16], strides = [1, 1]} : vector<64x32xf32> to vector<64x16xf32>
    %68 = vector.extract_strided_slice %66 {offsets = [0, 0], sizes = [64, 16], strides = [1, 1]} : vector<64x32xf32> to vector<64x16xf32>
    %69 = arith.maximumf %67, %68 : vector<64x16xf32>
    %c2_36 = arith.constant 2 : index
    %c0_37 = arith.constant 0 : index
    %70 = memref.load %arg4[%c2_36, %c0_37] : memref<4x4xf32, #tpu.memory_space<smem>>
    %71 = vector.broadcast %70 : f32 to vector<16x8x32xf32>
    %72 = arith.mulf %71, %1 : vector<16x8x32xf32>
    %c2_38 = arith.constant 2 : index
    %c1_39 = arith.constant 1 : index
    %73 = memref.load %arg4[%c2_38, %c1_39] : memref<4x4xf32, #tpu.memory_space<smem>>
    %74 = vector.broadcast %73 : f32 to vector<16x8x32xf32>
    %75 = arith.mulf %74, %3 : vector<16x8x32xf32>
    %76 = arith.addf %72, %75 : vector<16x8x32xf32>
    %c2_40 = arith.constant 2 : index
    %c2_41 = arith.constant 2 : index
    %77 = memref.load %arg4[%c2_40, %c2_41] : memref<4x4xf32, #tpu.memory_space<smem>>
    %78 = vector.broadcast %77 : f32 to vector<16x8x32xf32>
    %79 = arith.mulf %78, %5 : vector<16x8x32xf32>
    %80 = arith.addf %76, %79 : vector<16x8x32xf32>
    %c2_42 = arith.constant 2 : index
    %c3_43 = arith.constant 3 : index
    %81 = memref.load %arg4[%c2_42, %c3_43] : memref<4x4xf32, #tpu.memory_space<smem>>
    %82 = vector.broadcast %81 : f32 to vector<16x8x32xf32>
    %83 = arith.mulf %82, %7 : vector<16x8x32xf32>
    %84 = arith.addf %80, %83 : vector<16x8x32xf32>
    %c2_44 = arith.constant 2 : index
    %85 = memref.load %arg5[%c2_44] : memref<4xf32, #tpu.memory_space<smem>>
    %86 = vector.broadcast %85 : f32 to vector<16x8x32xf32>
    %87 = arith.addf %84, %86 : vector<16x8x32xf32>
    %cst_45 = arith.constant 0.000000e+00 : f32
    %88 = vector.broadcast %cst_45 : f32 to vector<16x8x32xf32>
    %89 = arith.maximumf %87, %88 : vector<16x8x32xf32>
    %90 = vector.shape_cast %89 : vector<16x8x32xf32> to vector<8x2x8x32xf32>
    %91 = vector.extract_strided_slice %90 {offsets = [0, 0, 0, 0], sizes = [8, 1, 8, 32], strides = [1, 1, 1, 1]} : vector<8x2x8x32xf32> to vector<8x1x8x32xf32>
    %92 = vector.shape_cast %91 : vector<8x1x8x32xf32> to vector<8x8x32xf32>
    %93 = vector.extract_strided_slice %90 {offsets = [0, 1, 0, 0], sizes = [8, 1, 8, 32], strides = [1, 1, 1, 1]} : vector<8x2x8x32xf32> to vector<8x1x8x32xf32>
    %94 = vector.shape_cast %93 : vector<8x1x8x32xf32> to vector<8x8x32xf32>
    %95 = arith.maximumf %92, %94 : vector<8x8x32xf32>
    %96 = vector.shape_cast %95 : vector<8x8x32xf32> to vector<64x32xf32>
    %c16_i32_46 = arith.constant 16 : i32
    %97 = tpu.dynamic_rotate %96 by %c16_i32_46 dim 1 : vector<64x32xf32>, i32 -> vector<64x32xf32>
    %98 = vector.extract_strided_slice %96 {offsets = [0, 0], sizes = [64, 16], strides = [1, 1]} : vector<64x32xf32> to vector<64x16xf32>
    %99 = vector.extract_strided_slice %97 {offsets = [0, 0], sizes = [64, 16], strides = [1, 1]} : vector<64x32xf32> to vector<64x16xf32>
    %100 = arith.maximumf %98, %99 : vector<64x16xf32>
    %c3_47 = arith.constant 3 : index
    %c0_48 = arith.constant 0 : index
    %101 = memref.load %arg4[%c3_47, %c0_48] : memref<4x4xf32, #tpu.memory_space<smem>>
    %102 = vector.broadcast %101 : f32 to vector<16x8x32xf32>
    %103 = arith.mulf %102, %1 : vector<16x8x32xf32>
    %c3_49 = arith.constant 3 : index
    %c1_50 = arith.constant 1 : index
    %104 = memref.load %arg4[%c3_49, %c1_50] : memref<4x4xf32, #tpu.memory_space<smem>>
    %105 = vector.broadcast %104 : f32 to vector<16x8x32xf32>
    %106 = arith.mulf %105, %3 : vector<16x8x32xf32>
    %107 = arith.addf %103, %106 : vector<16x8x32xf32>
    %c3_51 = arith.constant 3 : index
    %c2_52 = arith.constant 2 : index
    %108 = memref.load %arg4[%c3_51, %c2_52] : memref<4x4xf32, #tpu.memory_space<smem>>
    %109 = vector.broadcast %108 : f32 to vector<16x8x32xf32>
    %110 = arith.mulf %109, %5 : vector<16x8x32xf32>
    %111 = arith.addf %107, %110 : vector<16x8x32xf32>
    %c3_53 = arith.constant 3 : index
    %c3_54 = arith.constant 3 : index
    %112 = memref.load %arg4[%c3_53, %c3_54] : memref<4x4xf32, #tpu.memory_space<smem>>
    %113 = vector.broadcast %112 : f32 to vector<16x8x32xf32>
    %114 = arith.mulf %113, %7 : vector<16x8x32xf32>
    %115 = arith.addf %111, %114 : vector<16x8x32xf32>
    %c3_55 = arith.constant 3 : index
    %116 = memref.load %arg5[%c3_55] : memref<4xf32, #tpu.memory_space<smem>>
    %117 = vector.broadcast %116 : f32 to vector<16x8x32xf32>
    %118 = arith.addf %115, %117 : vector<16x8x32xf32>
    %cst_56 = arith.constant 0.000000e+00 : f32
    %119 = vector.broadcast %cst_56 : f32 to vector<16x8x32xf32>
    %120 = arith.maximumf %118, %119 : vector<16x8x32xf32>
    %121 = vector.shape_cast %120 : vector<16x8x32xf32> to vector<8x2x8x32xf32>
    %122 = vector.extract_strided_slice %121 {offsets = [0, 0, 0, 0], sizes = [8, 1, 8, 32], strides = [1, 1, 1, 1]} : vector<8x2x8x32xf32> to vector<8x1x8x32xf32>
    %123 = vector.shape_cast %122 : vector<8x1x8x32xf32> to vector<8x8x32xf32>
    %124 = vector.extract_strided_slice %121 {offsets = [0, 1, 0, 0], sizes = [8, 1, 8, 32], strides = [1, 1, 1, 1]} : vector<8x2x8x32xf32> to vector<8x1x8x32xf32>
    %125 = vector.shape_cast %124 : vector<8x1x8x32xf32> to vector<8x8x32xf32>
    %126 = arith.maximumf %123, %125 : vector<8x8x32xf32>
    %127 = vector.shape_cast %126 : vector<8x8x32xf32> to vector<64x32xf32>
    %c16_i32_57 = arith.constant 16 : i32
    %128 = tpu.dynamic_rotate %127 by %c16_i32_57 dim 1 : vector<64x32xf32>, i32 -> vector<64x32xf32>
    %129 = vector.extract_strided_slice %127 {offsets = [0, 0], sizes = [64, 16], strides = [1, 1]} : vector<64x32xf32> to vector<64x16xf32>
    %130 = vector.extract_strided_slice %128 {offsets = [0, 0], sizes = [64, 16], strides = [1, 1]} : vector<64x32xf32> to vector<64x16xf32>
    %131 = arith.maximumf %129, %130 : vector<64x16xf32>
    %132 = tpu.concatenate %38, %69, %100, %131 in 0 : vector<64x16xf32>, vector<64x16xf32>, vector<64x16xf32>, vector<64x16xf32> -> vector<256x16xf32>
    %133 = tpu.iota {dimensions = array<i32: 0>} : vector<16x8xi32>
    %134 = tpu.iota {dimensions = array<i32: 1>} : vector<16x8xi32>
    %c2_i32 = arith.constant 2 : i32
    %135 = vector.broadcast %c2_i32 : i32 to vector<16x8xi32>
    %136 = arith.muli %135, %134 : vector<16x8xi32>
    %137 = arith.cmpi eq, %133, %136 : vector<16x8xi32>
    %138 = arith.extui %137 : vector<16x8xi1> to vector<16x8xi32>
    %139 = arith.sitofp %138 : vector<16x8xi32> to vector<16x8xf32>
    %c2_i32_58 = arith.constant 2 : i32
    %140 = vector.broadcast %c2_i32_58 : i32 to vector<16x8xi32>
    %141 = arith.muli %140, %134 : vector<16x8xi32>
    %c1_i32 = arith.constant 1 : i32
    %142 = vector.broadcast %c1_i32 : i32 to vector<16x8xi32>
    %143 = arith.addi %141, %142 : vector<16x8xi32>
    %144 = arith.cmpi eq, %133, %143 : vector<16x8xi32>
    %145 = arith.extui %144 : vector<16x8xi1> to vector<16x8xi32>
    %146 = arith.sitofp %145 : vector<16x8xi32> to vector<16x8xf32>
    %cst_59 = arith.constant dense<0.000000e+00> : vector<256x8xf32>
    %147 = tpu.matmul %132, %139, %cst_59 {dimension_numbers = #tpu.dot_dimension_numbers<[1], [0], [0], [1], [0, 0, 1, 1], [], []>} : vector<256x16xf32>, vector<16x8xf32>, vector<256x8xf32> -> vector<256x8xf32>
    %cst_60 = arith.constant dense<0.000000e+00> : vector<256x8xf32>
    %148 = tpu.matmul %132, %146, %cst_60 {dimension_numbers = #tpu.dot_dimension_numbers<[1], [0], [0], [1], [0, 0, 1, 1], [], []>} : vector<256x16xf32>, vector<16x8xf32>, vector<256x8xf32> -> vector<256x8xf32>
    %149 = arith.maximumf %147, %148 : vector<256x8xf32>
    %150 = vector.shape_cast %149 : vector<256x8xf32> to vector<4x8x8x8xf32>
    %c0_61 = arith.constant 0 : index
    %c0_62 = arith.constant 0 : index
    %c0_63 = arith.constant 0 : index
    %c0_64 = arith.constant 0 : index
    %c0_65 = arith.constant 0 : index
    %151 = vector.load %arg6[%c0_61, %c0_62, %c0_63, %c0_64, %c0_65] : memref<1x4x8x8x8xf32, #tpu.memory_space<vmem>>, vector<1x4x8x8x8xf32>
    %152 = vector.shape_cast %151 : vector<1x4x8x8x8xf32> to vector<4x8x8x8xf32>
    %153 = vector.shape_cast %150 : vector<4x8x8x8xf32> to vector<1x4x8x8x8xf32>
    tpu.vector_store %arg6[%c0_61, %c0_62, %c0_63, %c0_64, %c0_65], %153 {strides = array<i32>} : memref<1x4x8x8x8xf32, #tpu.memory_space<vmem>>, vector<1x4x8x8x8xf32>,
    return
  }
  func.func @transform_0(%arg0: i32, %arg1: i32, %arg2: i32) -> (i32, i32, i32, i32, i32) {
    %c0_i32 = arith.constant 0 : i32
    %c0_i32_0 = arith.constant 0 : i32
    %c0_i32_1 = arith.constant 0 : i32
    return %arg0, %c0_i32, %arg1, %arg2, %c0_i32_0 : i32, i32, i32, i32, i32
  }
  func.func @transform_1(%arg0: i32, %arg1: i32, %arg2: i32) -> (i32, i32) {
    %c0_i32 = arith.constant 0 : i32
    %c0_i32_0 = arith.constant 0 : i32
    %c0_i32_1 = arith.constant 0 : i32
    return %c0_i32, %c0_i32_0 : i32, i32
  }
  func.func @transform_2(%arg0: i32, %arg1: i32, %arg2: i32) -> i32 {
    %c0_i32 = arith.constant 0 : i32
    %c0_i32_0 = arith.constant 0 : i32
    return %c0_i32 : i32
  }
  func.func @transform_3(%arg0: i32, %arg1: i32, %arg2: i32) -> (i32, i32, i32, i32, i32) {
    %c0_i32 = arith.constant 0 : i32
    %c0_i32_0 = arith.constant 0 : i32
    %c0_i32_1 = arith.constant 0 : i32
    return %arg0, %c0_i32, %arg1, %arg2, %c0_i32_0 : i32, i32, i32, i32, i32
  }
}

</mosaic_0001>

<llo_original>
// kernel: tpu_custom_call.1
$region0: #{tpu_custom_call.1}
  #allocation0 [shape = 'u32[]', space=smem, size = 0x4, offset = 0x4, fixed_abs, tag = 'smem constant byte address 0x4 - core index']
  #allocation1 [shape = 'u32[144,128]{1,0:T(1,128)}', space=vmem, size = 0x12000, scoped, tag = 'internal scratch']
  %s0 = inlined_call_operand.hbm [shape: f32[2,4,16,8,32], index: 0, kind: input, shape index: {}]
  %s1 = inlined_call_operand.hbm [shape: f32[4,4], index: 1, kind: input, shape index: {}]
  %s2 = inlined_call_operand.vmem [shape: f32[4], index: 2, kind: input, shape index: {}]
  %s3 = inlined_call_operand.hbm [shape: f32[2,4,8,8,8], index: 3, kind: output, shape index: {}]
  %s4 = sld [smem:[#allocation0]]
  $region57: #{tpu_custom_call.1} parent=0
    _
  %s6 = ssub.s32 1, %s4
  %s7 = scalar_select 0, %s6, %s4
  $region1: #{tpu_custom_call.1} parent=0
    #allocation2 [shape = 'u8[524288]{0}', space=vmem, size = 0x80000, scoped, tag = 'input window, operand 0']
    #allocation3 [shape = 's32[2]{0}', space=sflag, size = 0x8, scoped, tag = 'scoped memory for tpu_custom_call.1']
    #allocation4 [shape = 's32[2]{0}', space=sflag, size = 0x8, scoped, tag = 'scoped memory for tpu_custom_call.1']
    #allocation5 [shape = 's32[2]{0}', space=sflag, size = 0x8, scoped, tag = 'scoped memory for tpu_custom_call.1']
    #allocation6 [shape = 's32[2]{0}', space=sflag, size = 0x8, scoped, tag = 'scoped memory for tpu_custom_call.1']
    #allocation7 [shape = 'u8[2048]{0}', space=smem, size = 0x800, scoped, tag = 'input window, operand 1, single buffered']
    #allocation8 [shape = 'u8[512]{0}', space=smem, size = 0x200, scoped, tag = 'input window, operand 2, single buffered']
    #allocation9 [shape = 'u8[262144]{0}', space=vmem, size = 0x40000, scoped, tag = 'output window, operand 0']
    %8 = vsyncpa [#allocation3], 0
    %s9 = scalar_lea.sflag [#allocation3], 1
    %10 = vsyncpa %s9, 0
    %11 = vsyncpa [#allocation5], 0
    %12 = vsyncpa [#allocation6], 0
    %13 = vsyncpa [#allocation4], 0
    %s14 = scalar_lea.sflag [#allocation4], 1
    %15 = vsyncpa %s14, 0
    loop: start=0, step=1, limit=4
    $region2: #{tpu_custom_call.1} parent=1 // loop_pre_header
      _
    $region3: #{tpu_custom_call.1} parent=1 // loop_header
      %s17 = sphi 0, %s21
      %p18 = scmp.ge.s32.totalorder %s17, 4
      %s24 = sphi 0, %s43
      %s25 = sphi 0, %s39
      %s26 = sphi 0, %s35
      %s27 = sphi 0, %s24
      %s28 = sphi 0, %s25
      %s29 = sphi 0, %s26
      %s30 = sphi 0, %s27
      %s31 = sphi 0, %s28
      %s32 = sphi 0, %s29
      %s50 = sphi 0, %s52
      %s53 = sphi 0, %s50
      %s54 = sphi 0, %s53
      %s70 = sphi 0, %s54
      %s74 = sphi 0, %s74
      %s76 = sphi 0, %s74
      %s77 = sphi 0, %s76
      %s91 = sphi 0, %s77
      %s95 = sphi 0, %s95
      %s97 = sphi 0, %s95
      %s98 = sphi 0, %s97
      %s112 = sphi 0, %s98
      %s122 = sphi 0, %s124
      %s125 = sphi 0, %s122
      %s126 = sphi 0, %s125
      %s142 = sphi 0, %s126
    $region4: #{tpu_custom_call.1} parent=1 // loop_header_branch
      %20 = sbr.rel (%p18) target = $region8
    $region5: #{tpu_custom_call.1} parent=1 // loop_body
      %s22 = ssub.s32 %s17, 1
      %s23 = ssub.s32 %s17, 2
      %s33 = sadd.s32 1, %s26
      %p34 = scmp.ge.s32.totalorder %s33, 1
      %s35 = scalar_select %p34, 0, %s33
      %s36 = sadd.s32 1, %s25
      %s37 = scalar_select %p34, %s36, %s25
      %p38 = scmp.ge.s32.totalorder %s37, 1
      %s39 = scalar_select %p38, 0, %s37
      %s40 = sadd.s32 1, %s24
      %s41 = scalar_select %p38, %s40, %s24
      %p42 = scmp.ge.s32.totalorder %s41, 2
      %s43 = scalar_select %p42, 0, %s41
      %s44 = ssub.s32 %s24, %s43
      %s45 = ssub.s32 %s25, %s39
      %s46 = sor.u32 %s44, %s45
      %s47 = ssub.s32 %s26, %s35
      %s48 = sor.u32 %s46, %s47
      %p49 = scmp.eq.s32.totalorder %s48, 0
      %s51 = sadd.s32 %s50, 1
      %s52 = scalar_select %p49, %s50, %s51
      %p55 = pneg %p49
      %p56 = scmp.eq.s32.totalorder %s17, 1
      %p57 = por %p55, %p56
      %p58 = scmp.ne.s32.totalorder %s50, %s53
      %p59 = scmp.eq.s32.totalorder %s17, 0
      %p60 = por %p58, %p59
      %p61 = scmp.ne.s32.totalorder %s50, %s53
      %p62 = scmp.eq.s32.totalorder %s22, 1
      %p63 = por %p61, %p62
      %p64 = scmp.ne.s32.totalorder %s53, %s54
      %p65 = scmp.eq.s32.totalorder %s22, 0
      %p66 = por %p64, %p65
      %p67 = scmp.ne.s32.totalorder %s53, %s54
      %p68 = scmp.eq.s32.totalorder %s23, 1
      %p69 = por %p67, %p68
      %p71 = scmp.ne.s32.totalorder %s54, %s70
      %p72 = scmp.eq.s32.totalorder %s23, 0
      %p73 = por %p71, %p72
      %s75 = sadd.s32 %s74, 1
      %p78 = scmp.eq.s32.totalorder %s17, 1
      %p79 = scmp.ne.s32.totalorder %s74, %s76
      %p80 = scmp.eq.s32.totalorder %s17, 0
      %p81 = por %p79, %p80
      %p82 = scmp.ne.s32.totalorder %s74, %s76
      %p83 = scmp.eq.s32.totalorder %s22, 1
      %p84 = por %p82, %p83
      %p85 = scmp.ne.s32.totalorder %s76, %s77
      %p86 = scmp.eq.s32.totalorder %s22, 0
      %p87 = por %p85, %p86
      %p88 = scmp.ne.s32.totalorder %s76, %s77
      %p89 = scmp.eq.s32.totalorder %s23, 1
      %p90 = por %p88, %p89
      %p92 = scmp.ne.s32.totalorder %s77, %s91
      %p93 = scmp.eq.s32.totalorder %s23, 0
      %p94 = por %p92, %p93
      %s96 = sadd.s32 %s95, 1
      %p99 = scmp.eq.s32.totalorder %s17, 1
      %p100 = scmp.ne.s32.totalorder %s95, %s97
      %p101 = scmp.eq.s32.totalorder %s17, 0
      %p102 = por %p100, %p101
      %p103 = scmp.ne.s32.totalorder %s95, %s97
      %p104 = scmp.eq.s32.totalorder %s22, 1
      %p105 = por %p103, %p104
      %p106 = scmp.ne.s32.totalorder %s97, %s98
      %p107 = scmp.eq.s32.totalorder %s22, 0
      %p108 = por %p106, %p107
      %p109 = scmp.ne.s32.totalorder %s97, %s98
      %p110 = scmp.eq.s32.totalorder %s23, 1
      %p111 = por %p109, %p110
      %p113 = scmp.ne.s32.totalorder %s98, %s112
      %p114 = scmp.eq.s32.totalorder %s23, 0
      %p115 = por %p113, %p114
      %s116 = ssub.s32 %s24, %s43
      %s117 = ssub.s32 %s25, %s39
      %s118 = sor.u32 %s116, %s117
      %s119 = ssub.s32 %s26, %s35
      %s120 = sor.u32 %s118, %s119
      %p121 = scmp.eq.s32.totalorder %s120, 0
      %s123 = sadd.s32 %s122, 1
      %s124 = scalar_select %p121, %s122, %s123
      %p127 = pneg %p121
      %p128 = scmp.eq.s32.totalorder %s17, 1
      %p129 = por %p127, %p128
      %p130 = scmp.ne.s32.totalorder %s122, %s125
      %p131 = scmp.eq.s32.totalorder %s17, 0
      %p132 = por %p130, %p131
      %p133 = scmp.ne.s32.totalorder %s122, %s125
      %p134 = scmp.eq.s32.totalorder %s22, 1
      %p135 = por %p133, %p134
      %p136 = scmp.ne.s32.totalorder %s125, %s126
      %p137 = scmp.eq.s32.totalorder %s22, 0
      %p138 = por %p136, %p137
      %p139 = scmp.ne.s32.totalorder %s125, %s126
      %p140 = scmp.eq.s32.totalorder %s23, 1
      %p141 = por %p139, %p140
      %p143 = scmp.ne.s32.totalorder %s126, %s142
      %p144 = scmp.eq.s32.totalorder %s23, 0
      %p145 = por %p143, %p144
      %p146 = scmp.le.s32.totalorder 1, %s17
      %p147 = scmp.lt.s32.totalorder %s17, 3
      %p148 = pnand %p146, %p147
      %p149 = pneg %p148
      // Predicated region
      $region9: #{tpu_custom_call.1} parent=5 // pred_check
        _
      $region10: #{tpu_custom_call.1} parent=5 // pred_check_branch
        %151 = sbr.rel (%p148) target = $region12
      $region11: #{tpu_custom_call.1} parent=5 // pred_region
        %s152 = ssub.s32 %s17, 1
        // Predicated region
        $region13: #{tpu_custom_call.1} parent=11 // pred_check
          %p153 = pneg %p87
        $region14: #{tpu_custom_call.1} parent=11 // pred_check_branch
          %155 = sbr.rel (%p153) target = $region16
        $region15: #{tpu_custom_call.1} parent=11 // pred_region
          %s157 = ssub.s32 64, 64
          %158 = vsyncadd [#allocation5], %s157
          %161 = dma.hbm_to_smem %s1, 64, [#allocation7], [#allocation5]
        $region16: #{tpu_custom_call.1} parent=11 // pred_fallthru
          _
        // Predicated region
        $region17: #{tpu_custom_call.1} parent=11 // pred_check
          %p162 = pneg %p108
        $region18: #{tpu_custom_call.1} parent=11 // pred_check_branch
          %164 = sbr.rel (%p162) target = $region20
        $region19: #{tpu_custom_call.1} parent=11 // pred_region
          %s166 = ssub.s32 16, 16
          %167 = vsyncadd [#allocation6], %s166
          %s169 = sshll.u32 %s2, 4
          %s170 = int_to_ptr.vmem [resolvable:$true] %s169
          %172 = dma.vmem_to_smem %s170, 16, [#allocation8], [#allocation6]
        $region20: #{tpu_custom_call.1} parent=11 // pred_fallthru
          _
      $region12: #{tpu_custom_call.1} parent=5 // pred_fallthru
        _
      %p173 = scmp.lt.s32.totalorder %s17, 2
      // Predicated region
      $region21: #{tpu_custom_call.1} parent=5 // pred_check
        %p174 = pneg %p173
      $region22: #{tpu_custom_call.1} parent=5 // pred_check_branch
        %176 = sbr.rel (%p174) target = $region24
      $region23: #{tpu_custom_call.1} parent=5 // pred_region
        // Predicated region
        $region25: #{tpu_custom_call.1} parent=23 // pred_check
          %p177 = pneg %p60
        $region26: #{tpu_custom_call.1} parent=23 // pred_check_branch
          %179 = sbr.rel (%p177) target = $region28
        $region27: #{tpu_custom_call.1} parent=23 // pred_region
          %s180 = sand.u32 %s50, 1
          %s181 = scalar_lea.sflag [#allocation3], %s180
          %s182 = sand.u32 %s50, 1
          %s183 = smul.addr %s182, 512
          %s184 = scalar_lea.vmem [#allocation2], %s183
          %s185 = smul.u32 16, %s25
          %s187 = ssub.s32 8192, 8192
          %188 = vsyncadd %s181, %s187
          %s189 = sadd.s32 %s26, %s185
          %s190 = smul.addr %s24, 64
          %s191 = sadd.s32 %s189, %s190
          %s192 = smul.addr %s191, 128
          %s193 = scalar_lea.hbm %s0, %s192
          %s194 = sshll.u32 %s184, 4
          %s195 = int_to_ptr.vmem [resolvable:$true] %s194
          %200 = dma.hbm_to_vmem [thread:$0]  %s193, 8192, %s195, %s181, 128, 128, 8
        $region28: #{tpu_custom_call.1} parent=23 // pred_fallthru
          _
      $region24: #{tpu_custom_call.1} parent=5 // pred_fallthru
        _
      %p201 = scmp.le.s32.totalorder 1, %s17
      %p202 = scmp.lt.s32.totalorder %s17, 3
      %p203 = pnand %p201, %p202
      %p204 = pneg %p203
      // Predicated region
      $region29: #{tpu_custom_call.1} parent=5 // pred_check
        _
      $region30: #{tpu_custom_call.1} parent=5 // pred_check_branch
        %206 = sbr.rel (%p203) target = $region32
      $region31: #{tpu_custom_call.1} parent=5 // pred_region
        %s207 = ssub.s32 %s17, 1
        %s208 = sand.u32 %s53, 1
        %s209 = scalar_lea.sflag [#allocation3], %s208
        %s210 = sand.u32 %s53, 1
        %s211 = smul.addr %s210, 512
        %s212 = scalar_lea.vmem [#allocation2], %s211
        // Predicated region
        $region33: #{tpu_custom_call.1} parent=31 // pred_check
          %p213 = pneg %p66
        $region34: #{tpu_custom_call.1} parent=31 // pred_check_branch
          %215 = sbr.rel (%p213) target = $region36
        $region35: #{tpu_custom_call.1} parent=31 // pred_region
          %216 = dma.done %s209, 8192
        $region36: #{tpu_custom_call.1} parent=31 // pred_fallthru
          _
        // Predicated region
        $region37: #{tpu_custom_call.1} parent=31 // pred_check
          %p217 = pneg %p87
        $region38: #{tpu_custom_call.1} parent=31 // pred_check_branch
          %219 = sbr.rel (%p217) target = $region40
        $region39: #{tpu_custom_call.1} parent=31 // pred_region
          %220 = dma.done [#allocation5], 64
        $region40: #{tpu_custom_call.1} parent=31 // pred_fallthru
          _
        // Predicated region
        $region41: #{tpu_custom_call.1} parent=31 // pred_check
          %p221 = pneg %p108
        $region42: #{tpu_custom_call.1} parent=31 // pred_check_branch
          %223 = sbr.rel (%p221) target = $region44
        $region43: #{tpu_custom_call.1} parent=31 // pred_region
          %224 = dma.done [#allocation6], 16
        $region44: #{tpu_custom_call.1} parent=31 // pred_fallthru
          _
        %225 = sfence
        %s226 = sand.u32 %s53, 1
        %s227 = scalar_lea.sflag [#allocation3], %s226
        %s228 = sand.u32 %s53, 1
        %s229 = smul.addr %s228, 512
        %s230 = scalar_lea.vmem [#allocation2], %s229
        %p231 = pneg %p66
        %p232 = pneg %p63
        %p233 = pneg %p87
        %p234 = pneg %p84
        %p235 = pneg %p108
        %p236 = pneg %p105
        %p237 = pneg %p138
        %p238 = pneg %p135
        %s239 = sand.u32 %s125, 1
        %s240 = scalar_lea.sflag [#allocation4], %s239
        %s241 = sand.u32 %s125, 1
        %s242 = smul.addr %s241, 256
        %s243 = scalar_lea.vmem [#allocation9], %s242
        %s244 = smul.u32 16, %s28
        %s245 = smul.u32 8, %s28
        %v246 = vld [vmem:[%s212] sm:$0xff]
        %v247 = vld [vmem:[%s212 + $0x8] sm:$0xff]
        %v248 = vld [vmem:[%s212 + $0x10] sm:$0xff]
        %v249 = vld [vmem:[%s212 + $0x18] sm:$0xff]
        %v250 = vld [vmem:[%s212 + $0x20] sm:$0xff]
        %v251 = vld [vmem:[%s212 + $0x28] sm:$0xff]
        %v252 = vld [vmem:[%s212 + $0x30] sm:$0xff]
        %v253 = vld [vmem:[%s212 + $0x38] sm:$0xff]
        %v254 = vld [vmem:[%s212 + $0x40] sm:$0xff]
        %v255 = vld [vmem:[%s212 + $0x48] sm:$0xff]
        %v256 = vld [vmem:[%s212 + $0x50] sm:$0xff]
        %v257 = vld [vmem:[%s212 + $0x58] sm:$0xff]
        %v258 = vld [vmem:[%s212 + $0x60] sm:$0xff]
        %v259 = vld [vmem:[%s212 + $0x68] sm:$0xff]
        %v260 = vld [vmem:[%s212 + $0x70] sm:$0xff]
        %v261 = vld [vmem:[%s212 + $0x78] sm:$0xff]
        %s262 = scalar_lea.vmem %s212, 128 [#allocation2]
        %v263 = vld [vmem:[%s262] sm:$0xff]
        %v264 = vld [vmem:[%s262 + $0x8] sm:$0xff]
        %v265 = vld [vmem:[%s262 + $0x10] sm:$0xff]
        %v266 = vld [vmem:[%s262 + $0x18] sm:$0xff]
        %v267 = vld [vmem:[%s262 + $0x20] sm:$0xff]
        %v268 = vld [vmem:[%s262 + $0x28] sm:$0xff]
        %v269 = vld [vmem:[%s262 + $0x30] sm:$0xff]
        %v270 = vld [vmem:[%s262 + $0x38] sm:$0xff]
        %v271 = vld [vmem:[%s262 + $0x40] sm:$0xff]
        %v272 = vld [vmem:[%s262 + $0x48] sm:$0xff]
        %v273 = vld [vmem:[%s262 + $0x50] sm:$0xff]
        %v274 = vld [vmem:[%s262 + $0x58] sm:$0xff]
        %v275 = vld [vmem:[%s262 + $0x60] sm:$0xff]
        %v276 = vld [vmem:[%s262 + $0x68] sm:$0xff]
        %v277 = vld [vmem:[%s262 + $0x70] sm:$0xff]
        %v278 = vld [vmem:[%s262 + $0x78] sm:$0xff]
        %s279 = scalar_lea.vmem %s212, 256 [#allocation2]
        %v280 = vld [vmem:[%s279] sm:$0xff]
        %v281 = vld [vmem:[%s279 + $0x8] sm:$0xff]
        %v282 = vld [vmem:[%s279 + $0x10] sm:$0xff]
        %v283 = vld [vmem:[%s279 + $0x18] sm:$0xff]
        %v284 = vld [vmem:[%s279 + $0x20] sm:$0xff]
        %v285 = vld [vmem:[%s279 + $0x28] sm:$0xff]
        %v286 = vld [vmem:[%s279 + $0x30] sm:$0xff]
        %v287 = vld [vmem:[%s279 + $0x38] sm:$0xff]
        %v288 = vld [vmem:[%s279 + $0x40] sm:$0xff]
        %v289 = vld [vmem:[%s279 + $0x48] sm:$0xff]
        %v290 = vld [vmem:[%s279 + $0x50] sm:$0xff]
        %v291 = vld [vmem:[%s279 + $0x58] sm:$0xff]
        %v292 = vld [vmem:[%s279 + $0x60] sm:$0xff]
        %v293 = vld [vmem:[%s279 + $0x68] sm:$0xff]
        %v294 = vld [vmem:[%s279 + $0x70] sm:$0xff]
        %v295 = vld [vmem:[%s279 + $0x78] sm:$0xff]
        %s296 = scalar_lea.vmem %s212, 384 [#allocation2]
        %v297 = vld [vmem:[%s296] sm:$0xff]
        %v298 = vld [vmem:[%s296 + $0x8] sm:$0xff]
        %v299 = vld [vmem:[%s296 + $0x10] sm:$0xff]
        %v300 = vld [vmem:[%s296 + $0x18] sm:$0xff]
        %v301 = vld [vmem:[%s296 + $0x20] sm:$0xff]
        %v302 = vld [vmem:[%s296 + $0x28] sm:$0xff]
        %v303 = vld [vmem:[%s296 + $0x30] sm:$0xff]
        %v304 = vld [vmem:[%s296 + $0x38] sm:$0xff]
        %v305 = vld [vmem:[%s296 + $0x40] sm:$0xff]
        %v306 = vld [vmem:[%s296 + $0x48] sm:$0xff]
        %v307 = vld [vmem:[%s296 + $0x50] sm:$0xff]
        %v308 = vld [vmem:[%s296 + $0x58] sm:$0xff]
        %v309 = vld [vmem:[%s296 + $0x60] sm:$0xff]
        %v310 = vld [vmem:[%s296 + $0x68] sm:$0xff]
        %v311 = vld [vmem:[%s296 + $0x70] sm:$0xff]
        %v312 = vld [vmem:[%s296 + $0x78] sm:$0xff]
        %s313 = sld [smem:[#allocation7]]
        %v314 = vstv %s313
        %v315 = vmul.f32 %v314, %v246
        %v316 = vmul.f32 %v314, %v247
        %v317 = vmul.f32 %v314, %v248
        %v318 = vmul.f32 %v314, %v249
        %v319 = vmul.f32 %v314, %v250
        %v320 = vmul.f32 %v314, %v251
        %v321 = vmul.f32 %v314, %v252
        %v322 = vmul.f32 %v314, %v253
        %v323 = vmul.f32 %v314, %v254
        %v324 = vmul.f32 %v314, %v255
        %v325 = vmul.f32 %v314, %v256
        %v326 = vmul.f32 %v314, %v257
        %v327 = vmul.f32 %v314, %v258
        %v328 = vmul.f32 %v314, %v259
        %v329 = vmul.f32 %v314, %v260
        %v330 = vmul.f32 %v314, %v261
        %s331 = sld [smem:[#allocation7 + $0x1]]
        %v332 = vstv %s331
        %v333 = vmul.f32 %v332, %v263
        %v334 = vmul.f32 %v332, %v264
        %v335 = vmul.f32 %v332, %v265
        %v336 = vmul.f32 %v332, %v266
        %v337 = vmul.f32 %v332, %v267
        %v338 = vmul.f32 %v332, %v268
        %v339 = vmul.f32 %v332, %v269
        %v340 = vmul.f32 %v332, %v270
        %v341 = vmul.f32 %v332, %v271
        %v342 = vmul.f32 %v332, %v272
        %v343 = vmul.f32 %v332, %v273
        %v344 = vmul.f32 %v332, %v274
        %v345 = vmul.f32 %v332, %v275
        %v346 = vmul.f32 %v332, %v276
        %v347 = vmul.f32 %v332, %v277
        %v348 = vmul.f32 %v332, %v278
        %v349 = vadd.f32 %v315, %v333
        %v350 = vadd.f32 %v316, %v334
        %v351 = vadd.f32 %v317, %v335
        %v352 = vadd.f32 %v318, %v336
        %v353 = vadd.f32 %v319, %v337
        %v354 = vadd.f32 %v320, %v338
        %v355 = vadd.f32 %v321, %v339
        %v356 = vadd.f32 %v322, %v340
        %v357 = vadd.f32 %v323, %v341
        %v358 = vadd.f32 %v324, %v342
        %v359 = vadd.f32 %v325, %v343
        %v360 = vadd.f32 %v326, %v344
        %v361 = vadd.f32 %v327, %v345
        %v362 = vadd.f32 %v328, %v346
        %v363 = vadd.f32 %v329, %v347
        %v364 = vadd.f32 %v330, %v348
        %s365 = sld [smem:[#allocation7 + $0x2]]
        %v366 = vstv %s365
        %v367 = vmul.f32 %v366, %v280
        %v368 = vmul.f32 %v366, %v281
        %v369 = vmul.f32 %v366, %v282
        %v370 = vmul.f32 %v366, %v283
        %v371 = vmul.f32 %v366, %v284
        %v372 = vmul.f32 %v366, %v285
        %v373 = vmul.f32 %v366, %v286
        %v374 = vmul.f32 %v366, %v287
        %v375 = vmul.f32 %v366, %v288
        %v376 = vmul.f32 %v366, %v289
        %v377 = vmul.f32 %v366, %v290
        %v378 = vmul.f32 %v366, %v291
        %v379 = vmul.f32 %v366, %v292
        %v380 = vmul.f32 %v366, %v293
        %v381 = vmul.f32 %v366, %v294
        %v382 = vmul.f32 %v366, %v295
        %v383 = vadd.f32 %v349, %v367
        %v384 = vadd.f32 %v350, %v368
        %v385 = vadd.f32 %v351, %v369
        %v386 = vadd.f32 %v352, %v370
        %v387 = vadd.f32 %v353, %v371
        %v388 = vadd.f32 %v354, %v372
        %v389 = vadd.f32 %v355, %v373
        %v390 = vadd.f32 %v356, %v374
        %v391 = vadd.f32 %v357, %v375
        %v392 = vadd.f32 %v358, %v376
        %v393 = vadd.f32 %v359, %v377
        %v394 = vadd.f32 %v360, %v378
        %v395 = vadd.f32 %v361, %v379
        %v396 = vadd.f32 %v362, %v380
        %v397 = vadd.f32 %v363, %v381
        %v398 = vadd.f32 %v364, %v382
        %s399 = sld [smem:[#allocation7 + $0x3]]
        %v400 = vstv %s399
        %v401 = vmul.f32 %v400, %v297
        %v402 = vmul.f32 %v400, %v298
        %v403 = vmul.f32 %v400, %v299
        %v404 = vmul.f32 %v400, %v300
        %v405 = vmul.f32 %v400, %v301
        %v406 = vmul.f32 %v400, %v302
        %v407 = vmul.f32 %v400, %v303
        %v408 = vmul.f32 %v400, %v304
        %v409 = vmul.f32 %v400, %v305
        %v410 = vmul.f32 %v400, %v306
        %v411 = vmul.f32 %v400, %v307
        %v412 = vmul.f32 %v400, %v308
        %v413 = vmul.f32 %v400, %v309
        %v414 = vmul.f32 %v400, %v310
        %v415 = vmul.f32 %v400, %v311
        %v416 = vmul.f32 %v400, %v312
        %v417 = vadd.f32 %v383, %v401
        %v418 = vadd.f32 %v384, %v402
        %v419 = vadd.f32 %v385, %v403
        %v420 = vadd.f32 %v386, %v404
        %v421 = vadd.f32 %v387, %v405
        %v422 = vadd.f32 %v388, %v406
        %v423 = vadd.f32 %v389, %v407
        %v424 = vadd.f32 %v390, %v408
        %v425 = vadd.f32 %v391, %v409
        %v426 = vadd.f32 %v392, %v410
        %v427 = vadd.f32 %v393, %v411
        %v428 = vadd.f32 %v394, %v412
        %v429 = vadd.f32 %v395, %v413
        %v430 = vadd.f32 %v396, %v414
        %v431 = vadd.f32 %v397, %v415
        %v432 = vadd.f32 %v398, %v416
        %s433 = sld [smem:[#allocation8]]
        %v434 = vstv %s433
        %v435 = vadd.f32 %v417, %v434
        %v436 = vadd.f32 %v418, %v434
        %v437 = vadd.f32 %v419, %v434
        %v438 = vadd.f32 %v420, %v434
        %v439 = vadd.f32 %v421, %v434
        %v440 = vadd.f32 %v422, %v434
        %v441 = vadd.f32 %v423, %v434
        %v442 = vadd.f32 %v424, %v434
        %v443 = vadd.f32 %v425, %v434
        %v444 = vadd.f32 %v426, %v434
        %v445 = vadd.f32 %v427, %v434
        %v446 = vadd.f32 %v428, %v434
        %v447 = vadd.f32 %v429, %v434
        %v448 = vadd.f32 %v430, %v434
        %v449 = vadd.f32 %v431, %v434
        %v450 = vadd.f32 %v432, %v434
        %v451 = vmax.f32 %v435, 0.0
        %v452 = vmax.f32 %v436, 0.0
        %v453 = vmax.f32 %v437, 0.0
        %v454 = vmax.f32 %v438, 0.0
        %v455 = vmax.f32 %v439, 0.0
        %v456 = vmax.f32 %v440, 0.0
        %v457 = vmax.f32 %v441, 0.0
        %v458 = vmax.f32 %v442, 0.0
        %v459 = vmax.f32 %v443, 0.0
        %v460 = vmax.f32 %v444, 0.0
        %v461 = vmax.f32 %v445, 0.0
        %v462 = vmax.f32 %v446, 0.0
        %v463 = vmax.f32 %v447, 0.0
        %v464 = vmax.f32 %v448, 0.0
        %v465 = vmax.f32 %v449, 0.0
        %v466 = vmax.f32 %v450, 0.0
        %v467 = vmax.f32 %v451, %v452
        %v468 = vmax.f32 %v453, %v454
        %v469 = vmax.f32 %v455, %v456
        %v470 = vmax.f32 %v457, %v458
        %v471 = vmax.f32 %v459, %v460
        %v472 = vmax.f32 %v461, %v462
        %v473 = vmax.f32 %v463, %v464
        %v474 = vmax.f32 %v465, %v466
        %vm475 = vcmask 1047808
        %476 = vrot.lane.b32.xlu0 %v467, 32
        %v477 = vpop.permute.xlu0 %476
        %v478 = vsel %vm475, %v477, %v467
        %479 = vrot.lane.b32.xlu0 %v468, 32
        %v480 = vpop.permute.xlu0 %479
        %v481 = vsel %vm475, %v480, %v468
        %482 = vrot.lane.b32.xlu0 %v469, 32
        %v483 = vpop.permute.xlu0 %482
        %v484 = vsel %vm475, %v483, %v469
        %485 = vrot.lane.b32.xlu0 %v470, 32
        %v486 = vpop.permute.xlu0 %485
        %v487 = vsel %vm475, %v486, %v470
        %488 = vrot.lane.b32.xlu0 %v471, 32
        %v489 = vpop.permute.xlu0 %488
        %v490 = vsel %vm475, %v489, %v471
        %491 = vrot.lane.b32.xlu0 %v472, 32
        %v492 = vpop.permute.xlu0 %491
        %v493 = vsel %vm475, %v492, %v472
        %494 = vrot.lane.b32.xlu0 %v473, 32
        %v495 = vpop.permute.xlu0 %494
        %v496 = vsel %vm475, %v495, %v473
        %497 = vrot.lane.b32.xlu0 %v474, 32
        %v498 = vpop.permute.xlu0 %497
        %v499 = vsel %vm475, %v498, %v474
        %500 = vrot.lane.b32.xlu0 %v478, 32
        %v501 = vpop.permute.xlu0 %500
        %502 = vrot.lane.b32.xlu0 %v481, 32
        %v503 = vpop.permute.xlu0 %502
        %504 = vrot.lane.b32.xlu0 %v484, 32
        %v505 = vpop.permute.xlu0 %504
        %506 = vrot.lane.b32.xlu0 %v487, 32
        %v507 = vpop.permute.xlu0 %506
        %508 = vrot.lane.b32.xlu0 %v490, 32
        %v509 = vpop.permute.xlu0 %508
        %510 = vrot.lane.b32.xlu0 %v493, 32
        %v511 = vpop.permute.xlu0 %510
        %512 = vrot.lane.b32.xlu0 %v496, 32
        %v513 = vpop.permute.xlu0 %512
        %514 = vrot.lane.b32.xlu0 %v499, 32
        %v515 = vpop.permute.xlu0 %514
        %v516 = vsel %vm475, %v501, %v467
        %v517 = vsel %vm475, %v503, %v468
        %v518 = vsel %vm475, %v505, %v469
        %v519 = vsel %vm475, %v507, %v470
        %v520 = vsel %vm475, %v509, %v471
        %v521 = vsel %vm475, %v511, %v472
        %v522 = vsel %vm475, %v513, %v473
        %v523 = vsel %vm475, %v515, %v474
        %532 = vrot.lane.b32.xlu0 %v516, 112
        %v533 = vpop.permute.xlu0 %532
        %534 = vrot.lane.b32.xlu0 %v517, 112
        %v535 = vpop.permute.xlu0 %534
        %536 = vrot.lane.b32.xlu0 %v518, 112
        %v537 = vpop.permute.xlu0 %536
        %538 = vrot.lane.b32.xlu0 %v519, 112
        %v539 = vpop.permute.xlu0 %538
        %540 = vrot.lane.b32.xlu0 %v520, 112
        %v541 = vpop.permute.xlu0 %540
        %542 = vrot.lane.b32.xlu0 %v521, 112
        %v543 = vpop.permute.xlu0 %542
        %544 = vrot.lane.b32.xlu0 %v522, 112
        %v545 = vpop.permute.xlu0 %544
        %546 = vrot.lane.b32.xlu0 %v523, 112
        %v547 = vpop.permute.xlu0 %546
        %v556 = vmax.f32 %v467, %v533
        %v557 = vmax.f32 %v468, %v535
        %v558 = vmax.f32 %v469, %v537
        %v559 = vmax.f32 %v470, %v539
        %v560 = vmax.f32 %v471, %v541
        %v561 = vmax.f32 %v472, %v543
        %v562 = vmax.f32 %v473, %v545
        %v563 = vmax.f32 %v474, %v547
        %s564 = sld [smem:[#allocation7 + $0x80]]
        %v565 = vstv %s564
        %v566 = vmul.f32 %v565, %v246
        %v567 = vmul.f32 %v565, %v247
        %v568 = vmul.f32 %v565, %v248
        %v569 = vmul.f32 %v565, %v249
        %v570 = vmul.f32 %v565, %v250
        %v571 = vmul.f32 %v565, %v251
        %v572 = vmul.f32 %v565, %v252
        %v573 = vmul.f32 %v565, %v253
        %v574 = vmul.f32 %v565, %v254
        %v575 = vmul.f32 %v565, %v255
        %v576 = vmul.f32 %v565, %v256
        %v577 = vmul.f32 %v565, %v257
        %v578 = vmul.f32 %v565, %v258
        %v579 = vmul.f32 %v565, %v259
        %v580 = vmul.f32 %v565, %v260
        %v581 = vmul.f32 %v565, %v261
        %s582 = sld [smem:[#allocation7 + $0x81]]
        %v583 = vstv %s582
        %v584 = vmul.f32 %v583, %v263
        %v585 = vmul.f32 %v583, %v264
        %v586 = vmul.f32 %v583, %v265
        %v587 = vmul.f32 %v583, %v266
        %v588 = vmul.f32 %v583, %v267
        %v589 = vmul.f32 %v583, %v268
        %v590 = vmul.f32 %v583, %v269
        %v591 = vmul.f32 %v583, %v270
        %v592 = vmul.f32 %v583, %v271
        %v593 = vmul.f32 %v583, %v272
        %v594 = vmul.f32 %v583, %v273
        %v595 = vmul.f32 %v583, %v274
        %v596 = vmul.f32 %v583, %v275
        %v597 = vmul.f32 %v583, %v276
        %v598 = vmul.f32 %v583, %v277
        %v599 = vmul.f32 %v583, %v278
        %v600 = vadd.f32 %v566, %v584
        %v601 = vadd.f32 %v567, %v585
        %v602 = vadd.f32 %v568, %v586
        %v603 = vadd.f32 %v569, %v587
        %v604 = vadd.f32 %v570, %v588
        %v605 = vadd.f32 %v571, %v589
        %v606 = vadd.f32 %v572, %v590
        %v607 = vadd.f32 %v573, %v591
        %v608 = vadd.f32 %v574, %v592
        %v609 = vadd.f32 %v575, %v593
        %v610 = vadd.f32 %v576, %v594
        %v611 = vadd.f32 %v577, %v595
        %v612 = vadd.f32 %v578, %v596
        %v613 = vadd.f32 %v579, %v597
        %v614 = vadd.f32 %v580, %v598
        %v615 = vadd.f32 %v581, %v599
        %s616 = sld [smem:[#allocation7 + $0x82]]
        %v617 = vstv %s616
        %v618 = vmul.f32 %v617, %v280
        %v619 = vmul.f32 %v617, %v281
        %v620 = vmul.f32 %v617, %v282
        %v621 = vmul.f32 %v617, %v283
        %v622 = vmul.f32 %v617, %v284
        %v623 = vmul.f32 %v617, %v285
        %v624 = vmul.f32 %v617, %v286
        %v625 = vmul.f32 %v617, %v287
        %v626 = vmul.f32 %v617, %v288
        %v627 = vmul.f32 %v617, %v289
        %v628 = vmul.f32 %v617, %v290
        %v629 = vmul.f32 %v617, %v291
        %v630 = vmul.f32 %v617, %v292
        %v631 = vmul.f32 %v617, %v293
        %v632 = vmul.f32 %v617, %v294
        %v633 = vmul.f32 %v617, %v295
        %v634 = vadd.f32 %v600, %v618
        %v635 = vadd.f32 %v601, %v619
        %v636 = vadd.f32 %v602, %v620
        %v637 = vadd.f32 %v603, %v621
        %v638 = vadd.f32 %v604, %v622
        %v639 = vadd.f32 %v605, %v623
        %v640 = vadd.f32 %v606, %v624
        %v641 = vadd.f32 %v607, %v625
        %v642 = vadd.f32 %v608, %v626
        %v643 = vadd.f32 %v609, %v627
        %v644 = vadd.f32 %v610, %v628
        %v645 = vadd.f32 %v611, %v629
        %v646 = vadd.f32 %v612, %v630
        %v647 = vadd.f32 %v613, %v631
        %v648 = vadd.f32 %v614, %v632
        %v649 = vadd.f32 %v615, %v633
        %s650 = sld [smem:[#allocation7 + $0x83]]
        %v651 = vstv %s650
        %v652 = vmul.f32 %v651, %v297
        %v653 = vmul.f32 %v651, %v298
        %v654 = vmul.f32 %v651, %v299
        %v655 = vmul.f32 %v651, %v300
        %v656 = vmul.f32 %v651, %v301
        %v657 = vmul.f32 %v651, %v302
        %v658 = vmul.f32 %v651, %v303
        %v659 = vmul.f32 %v651, %v304
        %v660 = vmul.f32 %v651, %v305
        %v661 = vmul.f32 %v651, %v306
        %v662 = vmul.f32 %v651, %v307
        %v663 = vmul.f32 %v651, %v308
        %v664 = vmul.f32 %v651, %v309
        %v665 = vmul.f32 %v651, %v310
        %v666 = vmul.f32 %v651, %v311
        %v667 = vmul.f32 %v651, %v312
        %v668 = vadd.f32 %v634, %v652
        %v669 = vadd.f32 %v635, %v653
        %v670 = vadd.f32 %v636, %v654
        %v671 = vadd.f32 %v637, %v655
        %v672 = vadd.f32 %v638, %v656
        %v673 = vadd.f32 %v639, %v657
        %v674 = vadd.f32 %v640, %v658
        %v675 = vadd.f32 %v641, %v659
        %v676 = vadd.f32 %v642, %v660
        %v677 = vadd.f32 %v643, %v661
        %v678 = vadd.f32 %v644, %v662
        %v679 = vadd.f32 %v645, %v663
        %v680 = vadd.f32 %v646, %v664
        %v681 = vadd.f32 %v647, %v665
        %v682 = vadd.f32 %v648, %v666
        %v683 = vadd.f32 %v649, %v667
        %s684 = sld [smem:[#allocation8 + $0x1]]
        %v685 = vstv %s684
        %v686 = vadd.f32 %v668, %v685
        %v687 = vadd.f32 %v669, %v685
        %v688 = vadd.f32 %v670, %v685
        %v689 = vadd.f32 %v671, %v685
        %v690 = vadd.f32 %v672, %v685
        %v691 = vadd.f32 %v673, %v685
        %v692 = vadd.f32 %v674, %v685
        %v693 = vadd.f32 %v675, %v685
        %v694 = vadd.f32 %v676, %v685
        %v695 = vadd.f32 %v677, %v685
        %v696 = vadd.f32 %v678, %v685
        %v697 = vadd.f32 %v679, %v685
        %v698 = vadd.f32 %v680, %v685
        %v699 = vadd.f32 %v681, %v685
        %v700 = vadd.f32 %v682, %v685
        %v701 = vadd.f32 %v683, %v685
        %v702 = vmax.f32 %v686, 0.0
        %v703 = vmax.f32 %v687, 0.0
        %v704 = vmax.f32 %v688, 0.0
        %v705 = vmax.f32 %v689, 0.0
        %v706 = vmax.f32 %v690, 0.0
        %v707 = vmax.f32 %v691, 0.0
        %v708 = vmax.f32 %v692, 0.0
        %v709 = vmax.f32 %v693, 0.0
        %v710 = vmax.f32 %v694, 0.0
        %v711 = vmax.f32 %v695, 0.0
        %v712 = vmax.f32 %v696, 0.0
        %v713 = vmax.f32 %v697, 0.0
        %v714 = vmax.f32 %v698, 0.0
        %v715 = vmax.f32 %v699, 0.0
        %v716 = vmax.f32 %v700, 0.0
        %v717 = vmax.f32 %v701, 0.0
        %v718 = vmax.f32 %v702, %v703
        %v719 = vmax.f32 %v704, %v705
        %v720 = vmax.f32 %v706, %v707
        %v721 = vmax.f32 %v708, %v709
        %v722 = vmax.f32 %v710, %v711
        %v723 = vmax.f32 %v712, %v713
        %v724 = vmax.f32 %v714, %v715
        %v725 = vmax.f32 %v716, %v717
        %726 = vrot.lane.b32.xlu0 %v718, 32
        %v727 = vpop.permute.xlu0 %726
        %v728 = vsel %vm475, %v727, %v718
        %729 = vrot.lane.b32.xlu0 %v719, 32
        %v730 = vpop.permute.xlu0 %729
        %v731 = vsel %vm475, %v730, %v719
        %732 = vrot.lane.b32.xlu0 %v720, 32
        %v733 = vpop.permute.xlu0 %732
        %v734 = vsel %vm475, %v733, %v720
        %735 = vrot.lane.b32.xlu0 %v721, 32
        %v736 = vpop.permute.xlu0 %735
        %v737 = vsel %vm475, %v736, %v721
        %738 = vrot.lane.b32.xlu0 %v722, 32
        %v739 = vpop.permute.xlu0 %738
        %v740 = vsel %vm475, %v739, %v722
        %741 = vrot.lane.b32.xlu0 %v723, 32
        %v742 = vpop.permute.xlu0 %741
        %v743 = vsel %vm475, %v742, %v723
        %744 = vrot.lane.b32.xlu0 %v724, 32
        %v745 = vpop.permute.xlu0 %744
        %v746 = vsel %vm475, %v745, %v724
        %747 = vrot.lane.b32.xlu0 %v725, 32
        %v748 = vpop.permute.xlu0 %747
        %v749 = vsel %vm475, %v748, %v725
        %750 = vrot.lane.b32.xlu0 %v728, 32
        %v751 = vpop.permute.xlu0 %750
        %752 = vrot.lane.b32.xlu0 %v731, 32
        %v753 = vpop.permute.xlu0 %752
        %754 = vrot.lane.b32.xlu0 %v734, 32
        %v755 = vpop.permute.xlu0 %754
        %756 = vrot.lane.b32.xlu0 %v737, 32
        %v757 = vpop.permute.xlu0 %756
        %758 = vrot.lane.b32.xlu0 %v740, 32
        %v759 = vpop.permute.xlu0 %758
        %760 = vrot.lane.b32.xlu0 %v743, 32
        %v761 = vpop.permute.xlu0 %760
        %762 = vrot.lane.b32.xlu0 %v746, 32
        %v763 = vpop.permute.xlu0 %762
        %764 = vrot.lane.b32.xlu0 %v749, 32
        %v765 = vpop.permute.xlu0 %764
        %v766 = vsel %vm475, %v751, %v718
        %v767 = vsel %vm475, %v753, %v719
        %v768 = vsel %vm475, %v755, %v720
        %v769 = vsel %vm475, %v757, %v721
        %v770 = vsel %vm475, %v759, %v722
        %v771 = vsel %vm475, %v761, %v723
        %v772 = vsel %vm475, %v763, %v724
        %v773 = vsel %vm475, %v765, %v725
        %782 = vrot.lane.b32.xlu0 %v766, 112
        %v783 = vpop.permute.xlu0 %782
        %784 = vrot.lane.b32.xlu0 %v767, 112
        %v785 = vpop.permute.xlu0 %784
        %786 = vrot.lane.b32.xlu0 %v768, 112
        %v787 = vpop.permute.xlu0 %786
        %788 = vrot.lane.b32.xlu0 %v769, 112
        %v789 = vpop.permute.xlu0 %788
        %790 = vrot.lane.b32.xlu0 %v770, 112
        %v791 = vpop.permute.xlu0 %790
        %792 = vrot.lane.b32.xlu0 %v771, 112
        %v793 = vpop.permute.xlu0 %792
        %794 = vrot.lane.b32.xlu0 %v772, 112
        %v795 = vpop.permute.xlu0 %794
        %796 = vrot.lane.b32.xlu0 %v773, 112
        %v797 = vpop.permute.xlu0 %796
        %v806 = vmax.f32 %v718, %v783
        %v807 = vmax.f32 %v719, %v785
        %v808 = vmax.f32 %v720, %v787
        %v809 = vmax.f32 %v721, %v789
        %v810 = vmax.f32 %v722, %v791
        %v811 = vmax.f32 %v723, %v793
        %v812 = vmax.f32 %v724, %v795
        %v813 = vmax.f32 %v725, %v797
        %s814 = sld [smem:[#allocation7 + $0x100]]
        %v815 = vstv %s814
        %v816 = vmul.f32 %v815, %v246
        %v817 = vmul.f32 %v815, %v247
        %v818 = vmul.f32 %v815, %v248
        %v819 = vmul.f32 %v815, %v249
        %v820 = vmul.f32 %v815, %v250
        %v821 = vmul.f32 %v815, %v251
        %v822 = vmul.f32 %v815, %v252
        %v823 = vmul.f32 %v815, %v253
        %v824 = vmul.f32 %v815, %v254
        %v825 = vmul.f32 %v815, %v255
        %v826 = vmul.f32 %v815, %v256
        %v827 = vmul.f32 %v815, %v257
        %v828 = vmul.f32 %v815, %v258
        %v829 = vmul.f32 %v815, %v259
        %v830 = vmul.f32 %v815, %v260
        %v831 = vmul.f32 %v815, %v261
        %s832 = sld [smem:[#allocation7 + $0x101]]
        %v833 = vstv %s832
        %v834 = vmul.f32 %v833, %v263
        %v835 = vmul.f32 %v833, %v264
        %v836 = vmul.f32 %v833, %v265
        %v837 = vmul.f32 %v833, %v266
        %v838 = vmul.f32 %v833, %v267
        %v839 = vmul.f32 %v833, %v268
        %v840 = vmul.f32 %v833, %v269
        %v841 = vmul.f32 %v833, %v270
        %v842 = vmul.f32 %v833, %v271
        %v843 = vmul.f32 %v833, %v272
        %v844 = vmul.f32 %v833, %v273
        %v845 = vmul.f32 %v833, %v274
        %v846 = vmul.f32 %v833, %v275
        %v847 = vmul.f32 %v833, %v276
        %v848 = vmul.f32 %v833, %v277
        %v849 = vmul.f32 %v833, %v278
        %v850 = vadd.f32 %v816, %v834
        %v851 = vadd.f32 %v817, %v835
        %v852 = vadd.f32 %v818, %v836
        %v853 = vadd.f32 %v819, %v837
        %v854 = vadd.f32 %v820, %v838
        %v855 = vadd.f32 %v821, %v839
        %v856 = vadd.f32 %v822, %v840
        %v857 = vadd.f32 %v823, %v841
        %v858 = vadd.f32 %v824, %v842
        %v859 = vadd.f32 %v825, %v843
        %v860 = vadd.f32 %v826, %v844
        %v861 = vadd.f32 %v827, %v845
        %v862 = vadd.f32 %v828, %v846
        %v863 = vadd.f32 %v829, %v847
        %v864 = vadd.f32 %v830, %v848
        %v865 = vadd.f32 %v831, %v849
        %s866 = sld [smem:[#allocation7 + $0x102]]
        %v867 = vstv %s866
        %v868 = vmul.f32 %v867, %v280
        %v869 = vmul.f32 %v867, %v281
        %v870 = vmul.f32 %v867, %v282
        %v871 = vmul.f32 %v867, %v283
        %v872 = vmul.f32 %v867, %v284
        %v873 = vmul.f32 %v867, %v285
        %v874 = vmul.f32 %v867, %v286
        %v875 = vmul.f32 %v867, %v287
        %v876 = vmul.f32 %v867, %v288
        %v877 = vmul.f32 %v867, %v289
        %v878 = vmul.f32 %v867, %v290
        %v879 = vmul.f32 %v867, %v291
        %v880 = vmul.f32 %v867, %v292
        %v881 = vmul.f32 %v867, %v293
        %v882 = vmul.f32 %v867, %v294
        %v883 = vmul.f32 %v867, %v295
        %v884 = vadd.f32 %v850, %v868
        %v885 = vadd.f32 %v851, %v869
        %v886 = vadd.f32 %v852, %v870
        %v887 = vadd.f32 %v853, %v871
        %v888 = vadd.f32 %v854, %v872
        %v889 = vadd.f32 %v855, %v873
        %v890 = vadd.f32 %v856, %v874
        %v891 = vadd.f32 %v857, %v875
        %v892 = vadd.f32 %v858, %v876
        %v893 = vadd.f32 %v859, %v877
        %v894 = vadd.f32 %v860, %v878
        %v895 = vadd.f32 %v861, %v879
        %v896 = vadd.f32 %v862, %v880
        %v897 = vadd.f32 %v863, %v881
        %v898 = vadd.f32 %v864, %v882
        %v899 = vadd.f32 %v865, %v883
        %s900 = sld [smem:[#allocation7 + $0x103]]
        %v901 = vstv %s900
        %v902 = vmul.f32 %v901, %v297
        %v903 = vmul.f32 %v901, %v298
        %v904 = vmul.f32 %v901, %v299
        %v905 = vmul.f32 %v901, %v300
        %v906 = vmul.f32 %v901, %v301
        %v907 = vmul.f32 %v901, %v302
        %v908 = vmul.f32 %v901, %v303
        %v909 = vmul.f32 %v901, %v304
        %v910 = vmul.f32 %v901, %v305
        %v911 = vmul.f32 %v901, %v306
        %v912 = vmul.f32 %v901, %v307
        %v913 = vmul.f32 %v901, %v308
        %v914 = vmul.f32 %v901, %v309
        %v915 = vmul.f32 %v901, %v310
        %v916 = vmul.f32 %v901, %v311
        %v917 = vmul.f32 %v901, %v312
        %v918 = vadd.f32 %v884, %v902
        %v919 = vadd.f32 %v885, %v903
        %v920 = vadd.f32 %v886, %v904
        %v921 = vadd.f32 %v887, %v905
        %v922 = vadd.f32 %v888, %v906
        %v923 = vadd.f32 %v889, %v907
        %v924 = vadd.f32 %v890, %v908
        %v925 = vadd.f32 %v891, %v909
        %v926 = vadd.f32 %v892, %v910
        %v927 = vadd.f32 %v893, %v911
        %v928 = vadd.f32 %v894, %v912
        %v929 = vadd.f32 %v895, %v913
        %v930 = vadd.f32 %v896, %v914
        %v931 = vadd.f32 %v897, %v915
        %v932 = vadd.f32 %v898, %v916
        %v933 = vadd.f32 %v899, %v917
        %s934 = sld [smem:[#allocation8 + $0x2]]
        %v935 = vstv %s934
        %v936 = vadd.f32 %v918, %v935
        %v937 = vadd.f32 %v919, %v935
        %v938 = vadd.f32 %v920, %v935
        %v939 = vadd.f32 %v921, %v935
        %v940 = vadd.f32 %v922, %v935
        %v941 = vadd.f32 %v923, %v935
        %v942 = vadd.f32 %v924, %v935
        %v943 = vadd.f32 %v925, %v935
        %v944 = vadd.f32 %v926, %v935
        %v945 = vadd.f32 %v927, %v935
        %v946 = vadd.f32 %v928, %v935
        %v947 = vadd.f32 %v929, %v935
        %v948 = vadd.f32 %v930, %v935
        %v949 = vadd.f32 %v931, %v935
        %v950 = vadd.f32 %v932, %v935
        %v951 = vadd.f32 %v933, %v935
        %v952 = vmax.f32 %v936, 0.0
        %v953 = vmax.f32 %v937, 0.0
        %v954 = vmax.f32 %v938, 0.0
        %v955 = vmax.f32 %v939, 0.0
        %v956 = vmax.f32 %v940, 0.0
        %v957 = vmax.f32 %v941, 0.0
        %v958 = vmax.f32 %v942, 0.0
        %v959 = vmax.f32 %v943, 0.0
        %v960 = vmax.f32 %v944, 0.0
        %v961 = vmax.f32 %v945, 0.0
        %v962 = vmax.f32 %v946, 0.0
        %v963 = vmax.f32 %v947, 0.0
        %v964 = vmax.f32 %v948, 0.0
        %v965 = vmax.f32 %v949, 0.0
        %v966 = vmax.f32 %v950, 0.0
        %v967 = vmax.f32 %v951, 0.0
        %v968 = vmax.f32 %v952, %v953
        %v969 = vmax.f32 %v954, %v955
        %v970 = vmax.f32 %v956, %v957
        %v971 = vmax.f32 %v958, %v959
        %v972 = vmax.f32 %v960, %v961
        %v973 = vmax.f32 %v962, %v963
        %v974 = vmax.f32 %v964, %v965
        %v975 = vmax.f32 %v966, %v967
        %976 = vrot.lane.b32.xlu0 %v968, 32
        %v977 = vpop.permute.xlu0 %976
        %v978 = vsel %vm475, %v977, %v968
        %979 = vrot.lane.b32.xlu0 %v969, 32
        %v980 = vpop.permute.xlu0 %979
        %v981 = vsel %vm475, %v980, %v969
        %982 = vrot.lane.b32.xlu0 %v970, 32
        %v983 = vpop.permute.xlu0 %982
        %v984 = vsel %vm475, %v983, %v970
        %985 = vrot.lane.b32.xlu0 %v971, 32
        %v986 = vpop.permute.xlu0 %985
        %v987 = vsel %vm475, %v986, %v971
        %988 = vrot.lane.b32.xlu0 %v972, 32
        %v989 = vpop.permute.xlu0 %988
        %v990 = vsel %vm475, %v989, %v972
        %991 = vrot.lane.b32.xlu0 %v973, 32
        %v992 = vpop.permute.xlu0 %991
        %v993 = vsel %vm475, %v992, %v973
        %994 = vrot.lane.b32.xlu0 %v974, 32
        %v995 = vpop.permute.xlu0 %994
        %v996 = vsel %vm475, %v995, %v974
        %997 = vrot.lane.b32.xlu0 %v975, 32
        %v998 = vpop.permute.xlu0 %997
        %v999 = vsel %vm475, %v998, %v975
        %1000 = vrot.lane.b32.xlu0 %v978, 32
        %v1001 = vpop.permute.xlu0 %1000
        %1002 = vrot.lane.b32.xlu0 %v981, 32
        %v1003 = vpop.permute.xlu0 %1002
        %1004 = vrot.lane.b32.xlu0 %v984, 32
        %v1005 = vpop.permute.xlu0 %1004
        %1006 = vrot.lane.b32.xlu0 %v987, 32
        %v1007 = vpop.permute.xlu0 %1006
        %1008 = vrot.lane.b32.xlu0 %v990, 32
        %v1009 = vpop.permute.xlu0 %1008
        %1010 = vrot.lane.b32.xlu0 %v993, 32
        %v1011 = vpop.permute.xlu0 %1010
        %1012 = vrot.lane.b32.xlu0 %v996, 32
        %v1013 = vpop.permute.xlu0 %1012
        %1014 = vrot.lane.b32.xlu0 %v999, 32
        %v1015 = vpop.permute.xlu0 %1014
        %v1016 = vsel %vm475, %v1001, %v968
        %v1017 = vsel %vm475, %v1003, %v969
        %v1018 = vsel %vm475, %v1005, %v970
        %v1019 = vsel %vm475, %v1007, %v971
        %v1020 = vsel %vm475, %v1009, %v972
        %v1021 = vsel %vm475, %v1011, %v973
        %v1022 = vsel %vm475, %v1013, %v974
        %v1023 = vsel %vm475, %v1015, %v975
        %1032 = vrot.lane.b32.xlu0 %v1016, 112
        %v1033 = vpop.permute.xlu0 %1032
        %1034 = vrot.lane.b32.xlu0 %v1017, 112
        %v1035 = vpop.permute.xlu0 %1034
        %1036 = vrot.lane.b32.xlu0 %v1018, 112
        %v1037 = vpop.permute.xlu0 %1036
        %1038 = vrot.lane.b32.xlu0 %v1019, 112
        %v1039 = vpop.permute.xlu0 %1038
        %1040 = vrot.lane.b32.xlu0 %v1020, 112
        %v1041 = vpop.permute.xlu0 %1040
        %1042 = vrot.lane.b32.xlu0 %v1021, 112
        %v1043 = vpop.permute.xlu0 %1042
        %1044 = vrot.lane.b32.xlu0 %v1022, 112
        %v1045 = vpop.permute.xlu0 %1044
        %1046 = vrot.lane.b32.xlu0 %v1023, 112
        %v1047 = vpop.permute.xlu0 %1046
        %v1056 = vmax.f32 %v968, %v1033
        %v1057 = vmax.f32 %v969, %v1035
        %v1058 = vmax.f32 %v970, %v1037
        %v1059 = vmax.f32 %v971, %v1039
        %v1060 = vmax.f32 %v972, %v1041
        %v1061 = vmax.f32 %v973, %v1043
        %v1062 = vmax.f32 %v974, %v1045
        %v1063 = vmax.f32 %v975, %v1047
        %s1064 = sld [smem:[#allocation7 + $0x180]]
        %v1065 = vstv %s1064
        %v1066 = vmul.f32 %v1065, %v246
        %v1067 = vmul.f32 %v1065, %v247
        %v1068 = vmul.f32 %v1065, %v248
        %v1069 = vmul.f32 %v1065, %v249
        %v1070 = vmul.f32 %v1065, %v250
        %v1071 = vmul.f32 %v1065, %v251
        %v1072 = vmul.f32 %v1065, %v252
        %v1073 = vmul.f32 %v1065, %v253
        %v1074 = vmul.f32 %v1065, %v254
        %v1075 = vmul.f32 %v1065, %v255
        %v1076 = vmul.f32 %v1065, %v256
        %v1077 = vmul.f32 %v1065, %v257
        %v1078 = vmul.f32 %v1065, %v258
        %v1079 = vmul.f32 %v1065, %v259
        %v1080 = vmul.f32 %v1065, %v260
        %v1081 = vmul.f32 %v1065, %v261
        %s1082 = sld [smem:[#allocation7 + $0x181]]
        %v1083 = vstv %s1082
        %v1084 = vmul.f32 %v1083, %v263
        %v1085 = vmul.f32 %v1083, %v264
        %v1086 = vmul.f32 %v1083, %v265
        %v1087 = vmul.f32 %v1083, %v266
        %v1088 = vmul.f32 %v1083, %v267
        %v1089 = vmul.f32 %v1083, %v268
        %v1090 = vmul.f32 %v1083, %v269
        %v1091 = vmul.f32 %v1083, %v270
        %v1092 = vmul.f32 %v1083, %v271
        %v1093 = vmul.f32 %v1083, %v272
        %v1094 = vmul.f32 %v1083, %v273
        %v1095 = vmul.f32 %v1083, %v274
        %v1096 = vmul.f32 %v1083, %v275
        %v1097 = vmul.f32 %v1083, %v276
        %v1098 = vmul.f32 %v1083, %v277
        %v1099 = vmul.f32 %v1083, %v278
        %v1100 = vadd.f32 %v1066, %v1084
        %v1101 = vadd.f32 %v1067, %v1085
        %v1102 = vadd.f32 %v1068, %v1086
        %v1103 = vadd.f32 %v1069, %v1087
        %v1104 = vadd.f32 %v1070, %v1088
        %v1105 = vadd.f32 %v1071, %v1089
        %v1106 = vadd.f32 %v1072, %v1090
        %v1107 = vadd.f32 %v1073, %v1091
        %v1108 = vadd.f32 %v1074, %v1092
        %v1109 = vadd.f32 %v1075, %v1093
        %v1110 = vadd.f32 %v1076, %v1094
        %v1111 = vadd.f32 %v1077, %v1095
        %v1112 = vadd.f32 %v1078, %v1096
        %v1113 = vadd.f32 %v1079, %v1097
        %v1114 = vadd.f32 %v1080, %v1098
        %v1115 = vadd.f32 %v1081, %v1099
        %s1116 = sld [smem:[#allocation7 + $0x182]]
        %v1117 = vstv %s1116
        %v1118 = vmul.f32 %v1117, %v280
        %v1119 = vmul.f32 %v1117, %v281
        %v1120 = vmul.f32 %v1117, %v282
        %v1121 = vmul.f32 %v1117, %v283
        %v1122 = vmul.f32 %v1117, %v284
        %v1123 = vmul.f32 %v1117, %v285
        %v1124 = vmul.f32 %v1117, %v286
        %v1125 = vmul.f32 %v1117, %v287
        %v1126 = vmul.f32 %v1117, %v288
        %v1127 = vmul.f32 %v1117, %v289
        %v1128 = vmul.f32 %v1117, %v290
        %v1129 = vmul.f32 %v1117, %v291
        %v1130 = vmul.f32 %v1117, %v292
        %v1131 = vmul.f32 %v1117, %v293
        %v1132 = vmul.f32 %v1117, %v294
        %v1133 = vmul.f32 %v1117, %v295
        %v1134 = vadd.f32 %v1100, %v1118
        %v1135 = vadd.f32 %v1101, %v1119
        %v1136 = vadd.f32 %v1102, %v1120
        %v1137 = vadd.f32 %v1103, %v1121
        %v1138 = vadd.f32 %v1104, %v1122
        %v1139 = vadd.f32 %v1105, %v1123
        %v1140 = vadd.f32 %v1106, %v1124
        %v1141 = vadd.f32 %v1107, %v1125
        %v1142 = vadd.f32 %v1108, %v1126
        %v1143 = vadd.f32 %v1109, %v1127
        %v1144 = vadd.f32 %v1110, %v1128
        %v1145 = vadd.f32 %v1111, %v1129
        %v1146 = vadd.f32 %v1112, %v1130
        %v1147 = vadd.f32 %v1113, %v1131
        %v1148 = vadd.f32 %v1114, %v1132
        %v1149 = vadd.f32 %v1115, %v1133
        %s1150 = sld [smem:[#allocation7 + $0x183]]
        %v1151 = vstv %s1150
        %v1152 = vmul.f32 %v1151, %v297
        %v1153 = vmul.f32 %v1151, %v298
        %v1154 = vmul.f32 %v1151, %v299
        %v1155 = vmul.f32 %v1151, %v300
        %v1156 = vmul.f32 %v1151, %v301
        %v1157 = vmul.f32 %v1151, %v302
        %v1158 = vmul.f32 %v1151, %v303
        %v1159 = vmul.f32 %v1151, %v304
        %v1160 = vmul.f32 %v1151, %v305
        %v1161 = vmul.f32 %v1151, %v306
        %v1162 = vmul.f32 %v1151, %v307
        %v1163 = vmul.f32 %v1151, %v308
        %v1164 = vmul.f32 %v1151, %v309
        %v1165 = vmul.f32 %v1151, %v310
        %v1166 = vmul.f32 %v1151, %v311
        %v1167 = vmul.f32 %v1151, %v312
        %v1168 = vadd.f32 %v1134, %v1152
        %v1169 = vadd.f32 %v1135, %v1153
        %v1170 = vadd.f32 %v1136, %v1154
        %v1171 = vadd.f32 %v1137, %v1155
        %v1172 = vadd.f32 %v1138, %v1156
        %v1173 = vadd.f32 %v1139, %v1157
        %v1174 = vadd.f32 %v1140, %v1158
        %v1175 = vadd.f32 %v1141, %v1159
        %v1176 = vadd.f32 %v1142, %v1160
        %v1177 = vadd.f32 %v1143, %v1161
        %v1178 = vadd.f32 %v1144, %v1162
        %v1179 = vadd.f32 %v1145, %v1163
        %v1180 = vadd.f32 %v1146, %v1164
        %v1181 = vadd.f32 %v1147, %v1165
        %v1182 = vadd.f32 %v1148, %v1166
        %v1183 = vadd.f32 %v1149, %v1167
        %s1184 = sld [smem:[#allocation8 + $0x3]]
        %v1185 = vstv %s1184
        %v1186 = vadd.f32 %v1168, %v1185
        %v1187 = vadd.f32 %v1169, %v1185
        %v1188 = vadd.f32 %v1170, %v1185
        %v1189 = vadd.f32 %v1171, %v1185
        %v1190 = vadd.f32 %v1172, %v1185
        %v1191 = vadd.f32 %v1173, %v1185
        %v1192 = vadd.f32 %v1174, %v1185
        %v1193 = vadd.f32 %v1175, %v1185
        %v1194 = vadd.f32 %v1176, %v1185
        %v1195 = vadd.f32 %v1177, %v1185
        %v1196 = vadd.f32 %v1178, %v1185
        %v1197 = vadd.f32 %v1179, %v1185
        %v1198 = vadd.f32 %v1180, %v1185
        %v1199 = vadd.f32 %v1181, %v1185
        %v1200 = vadd.f32 %v1182, %v1185
        %v1201 = vadd.f32 %v1183, %v1185
        %v1202 = vmax.f32 %v1186, 0.0
        %v1203 = vmax.f32 %v1187, 0.0
        %v1204 = vmax.f32 %v1188, 0.0
        %v1205 = vmax.f32 %v1189, 0.0
        %v1206 = vmax.f32 %v1190, 0.0
        %v1207 = vmax.f32 %v1191, 0.0
        %v1208 = vmax.f32 %v1192, 0.0
        %v1209 = vmax.f32 %v1193, 0.0
        %v1210 = vmax.f32 %v1194, 0.0
        %v1211 = vmax.f32 %v1195, 0.0
        %v1212 = vmax.f32 %v1196, 0.0
        %v1213 = vmax.f32 %v1197, 0.0
        %v1214 = vmax.f32 %v1198, 0.0
        %v1215 = vmax.f32 %v1199, 0.0
        %v1216 = vmax.f32 %v1200, 0.0
        %v1217 = vmax.f32 %v1201, 0.0
        %v1218 = vmax.f32 %v1202, %v1203
        %v1219 = vmax.f32 %v1204, %v1205
        %v1220 = vmax.f32 %v1206, %v1207
        %v1221 = vmax.f32 %v1208, %v1209
        %v1222 = vmax.f32 %v1210, %v1211
        %v1223 = vmax.f32 %v1212, %v1213
        %v1224 = vmax.f32 %v1214, %v1215
        %v1225 = vmax.f32 %v1216, %v1217
        %1226 = vrot.lane.b32.xlu0 %v1218, 32
        %v1227 = vpop.permute.xlu0 %1226
        %v1228 = vsel %vm475, %v1227, %v1218
        %1229 = vrot.lane.b32.xlu0 %v1219, 32
        %v1230 = vpop.permute.xlu0 %1229
        %v1231 = vsel %vm475, %v1230, %v1219
        %1232 = vrot.lane.b32.xlu0 %v1220, 32
        %v1233 = vpop.permute.xlu0 %1232
        %v1234 = vsel %vm475, %v1233, %v1220
        %1235 = vrot.lane.b32.xlu0 %v1221, 32
        %v1236 = vpop.permute.xlu0 %1235
        %v1237 = vsel %vm475, %v1236, %v1221
        %1238 = vrot.lane.b32.xlu0 %v1222, 32
        %v1239 = vpop.permute.xlu0 %1238
        %v1240 = vsel %vm475, %v1239, %v1222
        %1241 = vrot.lane.b32.xlu0 %v1223, 32
        %v1242 = vpop.permute.xlu0 %1241
        %v1243 = vsel %vm475, %v1242, %v1223
        %1244 = vrot.lane.b32.xlu0 %v1224, 32
        %v1245 = vpop.permute.xlu0 %1244
        %v1246 = vsel %vm475, %v1245, %v1224
        %1247 = vrot.lane.b32.xlu0 %v1225, 32
        %v1248 = vpop.permute.xlu0 %1247
        %v1249 = vsel %vm475, %v1248, %v1225
        %1250 = vrot.lane.b32.xlu0 %v1228, 32
        %v1251 = vpop.permute.xlu0 %1250
        %1252 = vrot.lane.b32.xlu0 %v1231, 32
        %v1253 = vpop.permute.xlu0 %1252
        %1254 = vrot.lane.b32.xlu0 %v1234, 32
        %v1255 = vpop.permute.xlu0 %1254
        %1256 = vrot.lane.b32.xlu0 %v1237, 32
        %v1257 = vpop.permute.xlu0 %1256
        %1258 = vrot.lane.b32.xlu0 %v1240, 32
        %v1259 = vpop.permute.xlu0 %1258
        %1260 = vrot.lane.b32.xlu0 %v1243, 32
        %v1261 = vpop.permute.xlu0 %1260
        %1262 = vrot.lane.b32.xlu0 %v1246, 32
        %v1263 = vpop.permute.xlu0 %1262
        %1264 = vrot.lane.b32.xlu0 %v1249, 32
        %v1265 = vpop.permute.xlu0 %1264
        %v1266 = vsel %vm475, %v1251, %v1218
        %v1267 = vsel %vm475, %v1253, %v1219
        %v1268 = vsel %vm475, %v1255, %v1220
        %v1269 = vsel %vm475, %v1257, %v1221
        %v1270 = vsel %vm475, %v1259, %v1222
        %v1271 = vsel %vm475, %v1261, %v1223
        %v1272 = vsel %vm475, %v1263, %v1224
        %v1273 = vsel %vm475, %v1265, %v1225
        %1282 = vrot.lane.b32.xlu0 %v1266, 112
        %v1283 = vpop.permute.xlu0 %1282
        %1284 = vrot.lane.b32.xlu0 %v1267, 112
        %v1285 = vpop.permute.xlu0 %1284
        %1286 = vrot.lane.b32.xlu0 %v1268, 112
        %v1287 = vpop.permute.xlu0 %1286
        %1288 = vrot.lane.b32.xlu0 %v1269, 112
        %v1289 = vpop.permute.xlu0 %1288
        %1290 = vrot.lane.b32.xlu0 %v1270, 112
        %v1291 = vpop.permute.xlu0 %1290
        %1292 = vrot.lane.b32.xlu0 %v1271, 112
        %v1293 = vpop.permute.xlu0 %1292
        %1294 = vrot.lane.b32.xlu0 %v1272, 112
        %v1295 = vpop.permute.xlu0 %1294
        %1296 = vrot.lane.b32.xlu0 %v1273, 112
        %v1297 = vpop.permute.xlu0 %1296
        %v1306 = vmax.f32 %v1218, %v1283
        %v1307 = vmax.f32 %v1219, %v1285
        %v1308 = vmax.f32 %v1220, %v1287
        %v1309 = vmax.f32 %v1221, %v1289
        %v1310 = vmax.f32 %v1222, %v1291
        %v1311 = vmax.f32 %v1223, %v1293
        %v1312 = vmax.f32 %v1224, %v1295
        %v1313 = vmax.f32 %v1225, %v1297
        %v1314 = vlaneseq
        %v1315 = vshrl.u32 %v1314, 7
        %v1316 = vadd.s32 %v1315, 8
        %v1317 = vlaneseq
        %v1318 = vand.u32 %v1317, 127
        %v1319 = vmul.u32 %v1318, 2
        %vm1320 = vcmp.eq.s32.totalorder %v1315, %v1319
        %vm1321 = vcmp.eq.s32.totalorder %v1316, %v1319
        %v1322 = vsel %vm1320, 1, 0
        %v1323 = vsel %vm1321, 1, 0
        %v1324 = vcvt.s32.f32 %v1322
        %v1325 = vcvt.s32.f32 %v1323
        %v1326 = vadd.s32 %v1319, 1
        %vm1327 = vcmp.eq.s32.totalorder %v1315, %v1326
        %vm1328 = vcmp.eq.s32.totalorder %v1316, %v1326
        %v1329 = vsel %vm1327, 1, 0
        %v1330 = vsel %vm1328, 1, 0
        %v1331 = vcvt.s32.f32 %v1329
        %v1332 = vcvt.s32.f32 %v1330
        %vm1333 = vcmask 130048
        %v1335 = vsel %vm1333, %v556, 0
        %v1338 = vsel %vm1333, %v557, 0
        %v1341 = vsel %vm1333, %v558, 0
        %v1344 = vsel %vm1333, %v559, 0
        %v1347 = vsel %vm1333, %v560, 0
        %v1350 = vsel %vm1333, %v561, 0
        %v1353 = vsel %vm1333, %v562, 0
        %v1356 = vsel %vm1333, %v563, 0
        %v1359 = vsel %vm1333, %v806, 0
        %v1362 = vsel %vm1333, %v807, 0
        %v1365 = vsel %vm1333, %v808, 0
        %v1368 = vsel %vm1333, %v809, 0
        %v1371 = vsel %vm1333, %v810, 0
        %v1374 = vsel %vm1333, %v811, 0
        %v1377 = vsel %vm1333, %v812, 0
        %v1380 = vsel %vm1333, %v813, 0
        %v1383 = vsel %vm1333, %v1056, 0
        %v1386 = vsel %vm1333, %v1057, 0
        %v1389 = vsel %vm1333, %v1058, 0
        %v1392 = vsel %vm1333, %v1059, 0
        %v1395 = vsel %vm1333, %v1060, 0
        %v1398 = vsel %vm1333, %v1061, 0
        %v1401 = vsel %vm1333, %v1062, 0
        %v1404 = vsel %vm1333, %v1063, 0
        %v1407 = vsel %vm1333, %v1306, 0
        %v1410 = vsel %vm1333, %v1307, 0
        %v1413 = vsel %vm1333, %v1308, 0
        %v1416 = vsel %vm1333, %v1309, 0
        %v1419 = vsel %vm1333, %v1310, 0
        %v1422 = vsel %vm1333, %v1311, 0
        %v1425 = vsel %vm1333, %v1312, 0
        %v1428 = vsel %vm1333, %v1313, 0
        %1430 = vmatprep.subr.mxu0 0.0
        %1431 = vmatpush1.msra.mxu0 0.0
        %1432 = vmatprep.subr.mxu0 0.0
        %1433 = vmatpush1.msra.mxu0 0.0
        %1434 = vmatprep.subr.mxu0 0.0
        %1435 = vmatpush1.msra.mxu0 0.0
        %1436 = vmatprep.subr.mxu0 0.0
        %1437 = vmatpush1.msra.mxu0 0.0
        %1438 = vmatprep.subr.mxu0 0.0
        %1439 = vmatpush1.msra.mxu0 0.0
        %1440 = vmatprep.subr.mxu0 0.0
        %1441 = vmatpush1.msra.mxu0 0.0
        %1442 = vmatprep.subr.mxu0 0.0
        %1443 = vmatpush1.msra.mxu0 0.0
        %1444 = vmatprep.subr.mxu0 0.0
        %1445 = vmatpush1.msra.mxu0 0.0
        %1446 = vmatprep.subr.mxu0 0.0
        %1447 = vmatpush1.msra.mxu0 0.0
        %1448 = vmatprep.subr.mxu0 0.0
        %1449 = vmatpush1.msra.mxu0 0.0
        %1450 = vmatprep.subr.mxu0 0.0
        %1451 = vmatpush1.msra.mxu0 0.0
        %1452 = vmatprep.subr.mxu0 0.0
        %1453 = vmatpush1.msra.mxu0 0.0
        %1454 = vmatprep.subr.mxu0 0.0
        %1455 = vmatpush1.msra.mxu0 0.0
        %1456 = vmatprep.subr.mxu0 0.0
        %1457 = vmatpush1.msra.mxu0 0.0
        %1458 = vmatprep.subr.mxu0 0.0
        %1459 = vmatpush1.msra.mxu0 %v1325
        %1460 = vmatprep.subr.mxu0 0.0
        %1461 = vmatpush1.msra.mxu0 %v1324
        %1462 = vmatprep.subr.mxu0 0.0
        %1463 = vmatpush2.msra.mxu0 0.0
        %1464 = vmatprep.subr.mxu0 0.0
        %1465 = vmatpush2.msra.mxu0 0.0
        %1466 = vmatprep.subr.mxu0 0.0
        %1467 = vmatpush2.msra.mxu0 0.0
        %1468 = vmatprep.subr.mxu0 0.0
        %1469 = vmatpush2.msra.mxu0 0.0
        %1470 = vmatprep.subr.mxu0 0.0
        %1471 = vmatpush2.msra.mxu0 0.0
        %1472 = vmatprep.subr.mxu0 0.0
        %1473 = vmatpush2.msra.mxu0 0.0
        %1474 = vmatprep.subr.mxu0 0.0
        %1475 = vmatpush2.msra.mxu0 0.0
        %1476 = vmatprep.subr.mxu0 0.0
        %1477 = vmatpush2.msra.mxu0 0.0
        %1478 = vmatprep.subr.mxu0 0.0
        %1479 = vmatpush2.msra.mxu0 0.0
        %1480 = vmatprep.subr.mxu0 0.0
        %1481 = vmatpush2.msra.mxu0 0.0
        %1482 = vmatprep.subr.mxu0 0.0
        %1483 = vmatpush2.msra.mxu0 0.0
        %1484 = vmatprep.subr.mxu0 0.0
        %1485 = vmatpush2.msra.mxu0 0.0
        %1486 = vmatprep.subr.mxu0 0.0
        %1487 = vmatpush2.msra.mxu0 0.0
        %1488 = vmatprep.subr.mxu0 0.0
        %1489 = vmatpush2.msra.mxu0 0.0
        %1490 = vmatprep.subr.mxu0 0.0
        %1491 = vmatpush2.msra.mxu0 0.0
        %1492 = vmatprep.subr.mxu0 0.0
        %1493 = vmatpush2.msra.mxu0 0.0
        %1494 = vmatprep.mubr.f32.mxu0 0.0
        %1495 = vmatmul.mubr.f32.gmra.mxu0 %v1335
        %v1496 = vpop.f32.mrf.mxu0
        %v1497 = vadd.f32 0.0, %v1496
        %v1498 = vpop.f32.mrf.mxu0
        %1499 = vmatprep.mubr.f32.mxu0 0.0
        %1500 = vmatmul.mubr.f32.gmra.mxu0 %v1338
        %v1501 = vpop.f32.mrf.mxu0
        %v1502 = vadd.f32 0.0, %v1501
        %v1503 = vpop.f32.mrf.mxu0
        %1504 = vmatprep.mubr.f32.mxu0 0.0
        %1505 = vmatmul.mubr.f32.gmra.mxu0 %v1341
        %v1506 = vpop.f32.mrf.mxu0
        %v1507 = vadd.f32 0.0, %v1506
        %v1508 = vpop.f32.mrf.mxu0
        %1509 = vmatprep.mubr.f32.mxu0 0.0
        %1510 = vmatmul.mubr.f32.gmra.mxu0 %v1344
        %v1511 = vpop.f32.mrf.mxu0
        %v1512 = vadd.f32 0.0, %v1511
        %v1513 = vpop.f32.mrf.mxu0
        %1514 = vmatprep.mubr.f32.mxu0 0.0
        %1515 = vmatmul.mubr.f32.gmra.mxu0 %v1347
        %v1516 = vpop.f32.mrf.mxu0
        %v1517 = vadd.f32 0.0, %v1516
        %v1518 = vpop.f32.mrf.mxu0
        %1519 = vmatprep.mubr.f32.mxu0 0.0
        %1520 = vmatmul.mubr.f32.gmra.mxu0 %v1350
        %v1521 = vpop.f32.mrf.mxu0
        %v1522 = vadd.f32 0.0, %v1521
        %v1523 = vpop.f32.mrf.mxu0
        %1524 = vmatprep.mubr.f32.mxu0 0.0
        %1525 = vmatmul.mubr.f32.gmra.mxu0 %v1353
        %v1526 = vpop.f32.mrf.mxu0
        %v1527 = vadd.f32 0.0, %v1526
        %v1528 = vpop.f32.mrf.mxu0
        %1529 = vmatprep.mubr.f32.mxu0 0.0
        %1530 = vmatmul.mubr.f32.gmra.mxu0 %v1356
        %v1531 = vpop.f32.mrf.mxu0
        %v1532 = vadd.f32 0.0, %v1531
        %v1533 = vpop.f32.mrf.mxu0
        %1534 = vmatprep.mubr.f32.mxu0 0.0
        %1535 = vmatmul.mubr.f32.gmra.mxu0 %v1359
        %v1536 = vpop.f32.mrf.mxu0
        %v1537 = vadd.f32 0.0, %v1536
        %v1538 = vpop.f32.mrf.mxu0
        %1539 = vmatprep.mubr.f32.mxu0 0.0
        %1540 = vmatmul.mubr.f32.gmra.mxu0 %v1362
        %v1541 = vpop.f32.mrf.mxu0
        %v1542 = vadd.f32 0.0, %v1541
        %v1543 = vpop.f32.mrf.mxu0
        %1544 = vmatprep.mubr.f32.mxu0 0.0
        %1545 = vmatmul.mubr.f32.gmra.mxu0 %v1365
        %v1546 = vpop.f32.mrf.mxu0
        %v1547 = vadd.f32 0.0, %v1546
        %v1548 = vpop.f32.mrf.mxu0
        %1549 = vmatprep.mubr.f32.mxu0 0.0
        %1550 = vmatmul.mubr.f32.gmra.mxu0 %v1368
        %v1551 = vpop.f32.mrf.mxu0
        %v1552 = vadd.f32 0.0, %v1551
        %v1553 = vpop.f32.mrf.mxu0
        %1554 = vmatprep.mubr.f32.mxu0 0.0
        %1555 = vmatmul.mubr.f32.gmra.mxu0 %v1371
        %v1556 = vpop.f32.mrf.mxu0
        %v1557 = vadd.f32 0.0, %v1556
        %v1558 = vpop.f32.mrf.mxu0
        %1559 = vmatprep.mubr.f32.mxu0 0.0
        %1560 = vmatmul.mubr.f32.gmra.mxu0 %v1374
        %v1561 = vpop.f32.mrf.mxu0
        %v1562 = vadd.f32 0.0, %v1561
        %v1563 = vpop.f32.mrf.mxu0
        %1564 = vmatprep.mubr.f32.mxu0 0.0
        %1565 = vmatmul.mubr.f32.gmra.mxu0 %v1377
        %v1566 = vpop.f32.mrf.mxu0
        %v1567 = vadd.f32 0.0, %v1566
        %v1568 = vpop.f32.mrf.mxu0
        %1569 = vmatprep.mubr.f32.mxu0 0.0
        %1570 = vmatmul.mubr.f32.gmra.mxu0 %v1380
        %v1571 = vpop.f32.mrf.mxu0
        %v1572 = vadd.f32 0.0, %v1571
        %v1573 = vpop.f32.mrf.mxu0
        %1574 = vmatprep.mubr.f32.mxu0 0.0
        %1575 = vmatmul.mubr.f32.gmra.mxu0 %v1383
        %v1576 = vpop.f32.mrf.mxu0
        %v1577 = vadd.f32 0.0, %v1576
        %v1578 = vpop.f32.mrf.mxu0
        %1579 = vmatprep.mubr.f32.mxu0 0.0
        %1580 = vmatmul.mubr.f32.gmra.mxu0 %v1386
        %v1581 = vpop.f32.mrf.mxu0
        %v1582 = vadd.f32 0.0, %v1581
        %v1583 = vpop.f32.mrf.mxu0
        %1584 = vmatprep.mubr.f32.mxu0 0.0
        %1585 = vmatmul.mubr.f32.gmra.mxu0 %v1389
        %v1586 = vpop.f32.mrf.mxu0
        %v1587 = vadd.f32 0.0, %v1586
        %v1588 = vpop.f32.mrf.mxu0
        %1589 = vmatprep.mubr.f32.mxu0 0.0
        %1590 = vmatmul.mubr.f32.gmra.mxu0 %v1392
        %v1591 = vpop.f32.mrf.mxu0
        %v1592 = vadd.f32 0.0, %v1591
        %v1593 = vpop.f32.mrf.mxu0
        %1594 = vmatprep.mubr.f32.mxu0 0.0
        %1595 = vmatmul.mubr.f32.gmra.mxu0 %v1395
        %v1596 = vpop.f32.mrf.mxu0
        %v1597 = vadd.f32 0.0, %v1596
        %v1598 = vpop.f32.mrf.mxu0
        %1599 = vmatprep.mubr.f32.mxu0 0.0
        %1600 = vmatmul.mubr.f32.gmra.mxu0 %v1398
        %v1601 = vpop.f32.mrf.mxu0
        %v1602 = vadd.f32 0.0, %v1601
        %v1603 = vpop.f32.mrf.mxu0
        %1604 = vmatprep.mubr.f32.mxu0 0.0
        %1605 = vmatmul.mubr.f32.gmra.mxu0 %v1401
        %v1606 = vpop.f32.mrf.mxu0
        %v1607 = vadd.f32 0.0, %v1606
        %v1608 = vpop.f32.mrf.mxu0
        %1609 = vmatprep.mubr.f32.mxu0 0.0
        %1610 = vmatmul.mubr.f32.gmra.mxu0 %v1404
        %v1611 = vpop.f32.mrf.mxu0
        %v1612 = vadd.f32 0.0, %v1611
        %v1613 = vpop.f32.mrf.mxu0
        %1614 = vmatprep.mubr.f32.mxu0 0.0
        %1615 = vmatmul.mubr.f32.gmra.mxu0 %v1407
        %v1616 = vpop.f32.mrf.mxu0
        %v1617 = vadd.f32 0.0, %v1616
        %v1618 = vpop.f32.mrf.mxu0
        %1619 = vmatprep.mubr.f32.mxu0 0.0
        %1620 = vmatmul.mubr.f32.gmra.mxu0 %v1410
        %v1621 = vpop.f32.mrf.mxu0
        %v1622 = vadd.f32 0.0, %v1621
        %v1623 = vpop.f32.mrf.mxu0
        %1624 = vmatprep.mubr.f32.mxu0 0.0
        %1625 = vmatmul.mubr.f32.gmra.mxu0 %v1413
        %v1626 = vpop.f32.mrf.mxu0
        %v1627 = vadd.f32 0.0, %v1626
        %v1628 = vpop.f32.mrf.mxu0
        %1629 = vmatprep.mubr.f32.mxu0 0.0
        %1630 = vmatmul.mubr.f32.gmra.mxu0 %v1416
        %v1631 = vpop.f32.mrf.mxu0
        %v1632 = vadd.f32 0.0, %v1631
        %v1633 = vpop.f32.mrf.mxu0
        %1634 = vmatprep.mubr.f32.mxu0 0.0
        %1635 = vmatmul.mubr.f32.gmra.mxu0 %v1419
        %v1636 = vpop.f32.mrf.mxu0
        %v1637 = vadd.f32 0.0, %v1636
        %v1638 = vpop.f32.mrf.mxu0
        %1639 = vmatprep.mubr.f32.mxu0 0.0
        %1640 = vmatmul.mubr.f32.gmra.mxu0 %v1422
        %v1641 = vpop.f32.mrf.mxu0
        %v1642 = vadd.f32 0.0, %v1641
        %v1643 = vpop.f32.mrf.mxu0
        %1644 = vmatprep.mubr.f32.mxu0 0.0
        %1645 = vmatmul.mubr.f32.gmra.mxu0 %v1425
        %v1646 = vpop.f32.mrf.mxu0
        %v1647 = vadd.f32 0.0, %v1646
        %v1648 = vpop.f32.mrf.mxu0
        %1649 = vmatprep.mubr.f32.mxu0 0.0
        %1650 = vmatmul.mubr.f32.gmra.mxu0 %v1428
        %v1651 = vpop.f32.mrf.mxu0
        %v1652 = vadd.f32 0.0, %v1651
        %v1653 = vpop.f32.mrf.mxu0
        %1654 = vdwg.mxu0
        %1655 = vmatprep.subr.mxu0 0.0
        %1656 = vmatpush1.msra.mxu0 0.0
        %1657 = vmatprep.subr.mxu0 0.0
        %1658 = vmatpush1.msra.mxu0 0.0
        %1659 = vmatprep.subr.mxu0 0.0
        %1660 = vmatpush1.msra.mxu0 0.0
        %1661 = vmatprep.subr.mxu0 0.0
        %1662 = vmatpush1.msra.mxu0 0.0
        %1663 = vmatprep.subr.mxu0 0.0
        %1664 = vmatpush1.msra.mxu0 0.0
        %1665 = vmatprep.subr.mxu0 0.0
        %1666 = vmatpush1.msra.mxu0 0.0
        %1667 = vmatprep.subr.mxu0 0.0
        %1668 = vmatpush1.msra.mxu0 0.0
        %1669 = vmatprep.subr.mxu0 0.0
        %1670 = vmatpush1.msra.mxu0 0.0
        %1671 = vmatprep.subr.mxu0 0.0
        %1672 = vmatpush1.msra.mxu0 0.0
        %1673 = vmatprep.subr.mxu0 0.0
        %1674 = vmatpush1.msra.mxu0 0.0
        %1675 = vmatprep.subr.mxu0 0.0
        %1676 = vmatpush1.msra.mxu0 0.0
        %1677 = vmatprep.subr.mxu0 0.0
        %1678 = vmatpush1.msra.mxu0 0.0
        %1679 = vmatprep.subr.mxu0 0.0
        %1680 = vmatpush1.msra.mxu0 0.0
        %1681 = vmatprep.subr.mxu0 0.0
        %1682 = vmatpush1.msra.mxu0 0.0
        %1683 = vmatprep.subr.mxu0 0.0
        %1684 = vmatpush1.msra.mxu0 %v1332
        %1685 = vmatprep.subr.mxu0 0.0
        %1686 = vmatpush1.msra.mxu0 %v1331
        %1687 = vmatprep.subr.mxu0 0.0
        %1688 = vmatpush2.msra.mxu0 0.0
        %1689 = vmatprep.subr.mxu0 0.0
        %1690 = vmatpush2.msra.mxu0 0.0
        %1691 = vmatprep.subr.mxu0 0.0
        %1692 = vmatpush2.msra.mxu0 0.0
        %1693 = vmatprep.subr.mxu0 0.0
        %1694 = vmatpush2.msra.mxu0 0.0
        %1695 = vmatprep.subr.mxu0 0.0
        %1696 = vmatpush2.msra.mxu0 0.0
        %1697 = vmatprep.subr.mxu0 0.0
        %1698 = vmatpush2.msra.mxu0 0.0
        %1699 = vmatprep.subr.mxu0 0.0
        %1700 = vmatpush2.msra.mxu0 0.0
        %1701 = vmatprep.subr.mxu0 0.0
        %1702 = vmatpush2.msra.mxu0 0.0
        %1703 = vmatprep.subr.mxu0 0.0
        %1704 = vmatpush2.msra.mxu0 0.0
        %1705 = vmatprep.subr.mxu0 0.0
        %1706 = vmatpush2.msra.mxu0 0.0
        %1707 = vmatprep.subr.mxu0 0.0
        %1708 = vmatpush2.msra.mxu0 0.0
        %1709 = vmatprep.subr.mxu0 0.0
        %1710 = vmatpush2.msra.mxu0 0.0
        %1711 = vmatprep.subr.mxu0 0.0
        %1712 = vmatpush2.msra.mxu0 0.0
        %1713 = vmatprep.subr.mxu0 0.0
        %1714 = vmatpush2.msra.mxu0 0.0
        %1715 = vmatprep.subr.mxu0 0.0
        %1716 = vmatpush2.msra.mxu0 0.0
        %1717 = vmatprep.subr.mxu0 0.0
        %1718 = vmatpush2.msra.mxu0 0.0
        %1719 = vmatprep.mubr.f32.mxu0 0.0
        %1720 = vmatmul.mubr.f32.gmra.mxu0 %v1335
        %v1721 = vpop.f32.mrf.mxu0
        %v1722 = vadd.f32 0.0, %v1721
        %v1723 = vpop.f32.mrf.mxu0
        %1724 = vmatprep.mubr.f32.mxu0 0.0
        %1725 = vmatmul.mubr.f32.gmra.mxu0 %v1338
        %v1726 = vpop.f32.mrf.mxu0
        %v1727 = vadd.f32 0.0, %v1726
        %v1728 = vpop.f32.mrf.mxu0
        %1729 = vmatprep.mubr.f32.mxu0 0.0
        %1730 = vmatmul.mubr.f32.gmra.mxu0 %v1341
        %v1731 = vpop.f32.mrf.mxu0
        %v1732 = vadd.f32 0.0, %v1731
        %v1733 = vpop.f32.mrf.mxu0
        %1734 = vmatprep.mubr.f32.mxu0 0.0
        %1735 = vmatmul.mubr.f32.gmra.mxu0 %v1344
        %v1736 = vpop.f32.mrf.mxu0
        %v1737 = vadd.f32 0.0, %v1736
        %v1738 = vpop.f32.mrf.mxu0
        %1739 = vmatprep.mubr.f32.mxu0 0.0
        %1740 = vmatmul.mubr.f32.gmra.mxu0 %v1347
        %v1741 = vpop.f32.mrf.mxu0
        %v1742 = vadd.f32 0.0, %v1741
        %v1743 = vpop.f32.mrf.mxu0
        %1744 = vmatprep.mubr.f32.mxu0 0.0
        %1745 = vmatmul.mubr.f32.gmra.mxu0 %v1350
        %v1746 = vpop.f32.mrf.mxu0
        %v1747 = vadd.f32 0.0, %v1746
        %v1748 = vpop.f32.mrf.mxu0
        %1749 = vmatprep.mubr.f32.mxu0 0.0
        %1750 = vmatmul.mubr.f32.gmra.mxu0 %v1353
        %v1751 = vpop.f32.mrf.mxu0
        %v1752 = vadd.f32 0.0, %v1751
        %v1753 = vpop.f32.mrf.mxu0
        %1754 = vmatprep.mubr.f32.mxu0 0.0
        %1755 = vmatmul.mubr.f32.gmra.mxu0 %v1356
        %v1756 = vpop.f32.mrf.mxu0
        %v1757 = vadd.f32 0.0, %v1756
        %v1758 = vpop.f32.mrf.mxu0
        %1759 = vmatprep.mubr.f32.mxu0 0.0
        %1760 = vmatmul.mubr.f32.gmra.mxu0 %v1359
        %v1761 = vpop.f32.mrf.mxu0
        %v1762 = vadd.f32 0.0, %v1761
        %v1763 = vpop.f32.mrf.mxu0
        %1764 = vmatprep.mubr.f32.mxu0 0.0
        %1765 = vmatmul.mubr.f32.gmra.mxu0 %v1362
        %v1766 = vpop.f32.mrf.mxu0
        %v1767 = vadd.f32 0.0, %v1766
        %v1768 = vpop.f32.mrf.mxu0
        %1769 = vmatprep.mubr.f32.mxu0 0.0
        %1770 = vmatmul.mubr.f32.gmra.mxu0 %v1365
        %v1771 = vpop.f32.mrf.mxu0
        %v1772 = vadd.f32 0.0, %v1771
        %v1773 = vpop.f32.mrf.mxu0
        %1774 = vmatprep.mubr.f32.mxu0 0.0
        %1775 = vmatmul.mubr.f32.gmra.mxu0 %v1368
        %v1776 = vpop.f32.mrf.mxu0
        %v1777 = vadd.f32 0.0, %v1776
        %v1778 = vpop.f32.mrf.mxu0
        %1779 = vmatprep.mubr.f32.mxu0 0.0
        %1780 = vmatmul.mubr.f32.gmra.mxu0 %v1371
        %v1781 = vpop.f32.mrf.mxu0
        %v1782 = vadd.f32 0.0, %v1781
        %v1783 = vpop.f32.mrf.mxu0
        %1784 = vmatprep.mubr.f32.mxu0 0.0
        %1785 = vmatmul.mubr.f32.gmra.mxu0 %v1374
        %v1786 = vpop.f32.mrf.mxu0
        %v1787 = vadd.f32 0.0, %v1786
        %v1788 = vpop.f32.mrf.mxu0
        %1789 = vmatprep.mubr.f32.mxu0 0.0
        %1790 = vmatmul.mubr.f32.gmra.mxu0 %v1377
        %v1791 = vpop.f32.mrf.mxu0
        %v1792 = vadd.f32 0.0, %v1791
        %v1793 = vpop.f32.mrf.mxu0
        %1794 = vmatprep.mubr.f32.mxu0 0.0
        %1795 = vmatmul.mubr.f32.gmra.mxu0 %v1380
        %v1796 = vpop.f32.mrf.mxu0
        %v1797 = vadd.f32 0.0, %v1796
        %v1798 = vpop.f32.mrf.mxu0
        %1799 = vmatprep.mubr.f32.mxu0 0.0
        %1800 = vmatmul.mubr.f32.gmra.mxu0 %v1383
        %v1801 = vpop.f32.mrf.mxu0
        %v1802 = vadd.f32 0.0, %v1801
        %v1803 = vpop.f32.mrf.mxu0
        %1804 = vmatprep.mubr.f32.mxu0 0.0
        %1805 = vmatmul.mubr.f32.gmra.mxu0 %v1386
        %v1806 = vpop.f32.mrf.mxu0
        %v1807 = vadd.f32 0.0, %v1806
        %v1808 = vpop.f32.mrf.mxu0
        %1809 = vmatprep.mubr.f32.mxu0 0.0
        %1810 = vmatmul.mubr.f32.gmra.mxu0 %v1389
        %v1811 = vpop.f32.mrf.mxu0
        %v1812 = vadd.f32 0.0, %v1811
        %v1813 = vpop.f32.mrf.mxu0
        %1814 = vmatprep.mubr.f32.mxu0 0.0
        %1815 = vmatmul.mubr.f32.gmra.mxu0 %v1392
        %v1816 = vpop.f32.mrf.mxu0
        %v1817 = vadd.f32 0.0, %v1816
        %v1818 = vpop.f32.mrf.mxu0
        %1819 = vmatprep.mubr.f32.mxu0 0.0
        %1820 = vmatmul.mubr.f32.gmra.mxu0 %v1395
        %v1821 = vpop.f32.mrf.mxu0
        %v1822 = vadd.f32 0.0, %v1821
        %v1823 = vpop.f32.mrf.mxu0
        %1824 = vmatprep.mubr.f32.mxu0 0.0
        %1825 = vmatmul.mubr.f32.gmra.mxu0 %v1398
        %v1826 = vpop.f32.mrf.mxu0
        %v1827 = vadd.f32 0.0, %v1826
        %v1828 = vpop.f32.mrf.mxu0
        %1829 = vmatprep.mubr.f32.mxu0 0.0
        %1830 = vmatmul.mubr.f32.gmra.mxu0 %v1401
        %v1831 = vpop.f32.mrf.mxu0
        %v1832 = vadd.f32 0.0, %v1831
        %v1833 = vpop.f32.mrf.mxu0
        %1834 = vmatprep.mubr.f32.mxu0 0.0
        %1835 = vmatmul.mubr.f32.gmra.mxu0 %v1404
        %v1836 = vpop.f32.mrf.mxu0
        %v1837 = vadd.f32 0.0, %v1836
        %v1838 = vpop.f32.mrf.mxu0
        %1839 = vmatprep.mubr.f32.mxu0 0.0
        %1840 = vmatmul.mubr.f32.gmra.mxu0 %v1407
        %v1841 = vpop.f32.mrf.mxu0
        %v1842 = vadd.f32 0.0, %v1841
        %v1843 = vpop.f32.mrf.mxu0
        %1844 = vmatprep.mubr.f32.mxu0 0.0
        %1845 = vmatmul.mubr.f32.gmra.mxu0 %v1410
        %v1846 = vpop.f32.mrf.mxu0
        %v1847 = vadd.f32 0.0, %v1846
        %v1848 = vpop.f32.mrf.mxu0
        %1849 = vmatprep.mubr.f32.mxu0 0.0
        %1850 = vmatmul.mubr.f32.gmra.mxu0 %v1413
        %v1851 = vpop.f32.mrf.mxu0
        %v1852 = vadd.f32 0.0, %v1851
        %v1853 = vpop.f32.mrf.mxu0
        %1854 = vmatprep.mubr.f32.mxu0 0.0
        %1855 = vmatmul.mubr.f32.gmra.mxu0 %v1416
        %v1856 = vpop.f32.mrf.mxu0
        %v1857 = vadd.f32 0.0, %v1856
        %v1858 = vpop.f32.mrf.mxu0
        %1859 = vmatprep.mubr.f32.mxu0 0.0
        %1860 = vmatmul.mubr.f32.gmra.mxu0 %v1419
        %v1861 = vpop.f32.mrf.mxu0
        %v1862 = vadd.f32 0.0, %v1861
        %v1863 = vpop.f32.mrf.mxu0
        %1864 = vmatprep.mubr.f32.mxu0 0.0
        %1865 = vmatmul.mubr.f32.gmra.mxu0 %v1422
        %v1866 = vpop.f32.mrf.mxu0
        %v1867 = vadd.f32 0.0, %v1866
        %v1868 = vpop.f32.mrf.mxu0
        %1869 = vmatprep.mubr.f32.mxu0 0.0
        %1870 = vmatmul.mubr.f32.gmra.mxu0 %v1425
        %v1871 = vpop.f32.mrf.mxu0
        %v1872 = vadd.f32 0.0, %v1871
        %v1873 = vpop.f32.mrf.mxu0
        %1874 = vmatprep.mubr.f32.mxu0 0.0
        %1875 = vmatmul.mubr.f32.gmra.mxu0 %v1428
        %v1876 = vpop.f32.mrf.mxu0
        %v1877 = vadd.f32 0.0, %v1876
        %v1878 = vpop.f32.mrf.mxu0
        %1879 = vdwg.mxu0
        %v1880 = vmax.f32 %v1497, %v1722
        %v1881 = vmax.f32 %v1502, %v1727
        %v1882 = vmax.f32 %v1507, %v1732
        %v1883 = vmax.f32 %v1512, %v1737
        %v1884 = vmax.f32 %v1517, %v1742
        %v1885 = vmax.f32 %v1522, %v1747
        %v1886 = vmax.f32 %v1527, %v1752
        %v1887 = vmax.f32 %v1532, %v1757
        %v1888 = vmax.f32 %v1537, %v1762
        %v1889 = vmax.f32 %v1542, %v1767
        %v1890 = vmax.f32 %v1547, %v1772
        %v1891 = vmax.f32 %v1552, %v1777
        %v1892 = vmax.f32 %v1557, %v1782
        %v1893 = vmax.f32 %v1562, %v1787
        %v1894 = vmax.f32 %v1567, %v1792
        %v1895 = vmax.f32 %v1572, %v1797
        %v1896 = vmax.f32 %v1577, %v1802
        %v1897 = vmax.f32 %v1582, %v1807
        %v1898 = vmax.f32 %v1587, %v1812
        %v1899 = vmax.f32 %v1592, %v1817
        %v1900 = vmax.f32 %v1597, %v1822
        %v1901 = vmax.f32 %v1602, %v1827
        %v1902 = vmax.f32 %v1607, %v1832
        %v1903 = vmax.f32 %v1612, %v1837
        %v1904 = vmax.f32 %v1617, %v1842
        %v1905 = vmax.f32 %v1622, %v1847
        %v1906 = vmax.f32 %v1627, %v1852
        %v1907 = vmax.f32 %v1632, %v1857
        %v1908 = vmax.f32 %v1637, %v1862
        %v1909 = vmax.f32 %v1642, %v1867
        %v1910 = vmax.f32 %v1647, %v1872
        %v1911 = vmax.f32 %v1652, %v1877
        %vm1912 = vcmask 64512
        %1913 = vst.msk [vmem:[%s243] sm:$0xff] %vm1912, %v1880
        %1914 = vst.msk [vmem:[%s243 + $0x8] sm:$0xff] %vm1912, %v1881
        %1915 = vst.msk [vmem:[%s243 + $0x10] sm:$0xff] %vm1912, %v1882
        %1916 = vst.msk [vmem:[%s243 + $0x18] sm:$0xff] %vm1912, %v1883
        %1917 = vst.msk [vmem:[%s243 + $0x20] sm:$0xff] %vm1912, %v1884
        %1918 = vst.msk [vmem:[%s243 + $0x28] sm:$0xff] %vm1912, %v1885
        %1919 = vst.msk [vmem:[%s243 + $0x30] sm:$0xff] %vm1912, %v1886
        %1920 = vst.msk [vmem:[%s243 + $0x38] sm:$0xff] %vm1912, %v1887
        %1921 = vst.msk [vmem:[%s243 + $0x40] sm:$0xff] %vm1912, %v1888
        %1922 = vst.msk [vmem:[%s243 + $0x48] sm:$0xff] %vm1912, %v1889
        %1923 = vst.msk [vmem:[%s243 + $0x50] sm:$0xff] %vm1912, %v1890
        %1924 = vst.msk [vmem:[%s243 + $0x58] sm:$0xff] %vm1912, %v1891
        %1925 = vst.msk [vmem:[%s243 + $0x60] sm:$0xff] %vm1912, %v1892
        %1926 = vst.msk [vmem:[%s243 + $0x68] sm:$0xff] %vm1912, %v1893
        %1927 = vst.msk [vmem:[%s243 + $0x70] sm:$0xff] %vm1912, %v1894
        %1928 = vst.msk [vmem:[%s243 + $0x78] sm:$0xff] %vm1912, %v1895
        %1929 = vst.msk [vmem:[%s243 + $0x80] sm:$0xff] %vm1912, %v1896
        %1930 = vst.msk [vmem:[%s243 + $0x88] sm:$0xff] %vm1912, %v1897
        %1931 = vst.msk [vmem:[%s243 + $0x90] sm:$0xff] %vm1912, %v1898
        %1932 = vst.msk [vmem:[%s243 + $0x98] sm:$0xff] %vm1912, %v1899
        %1933 = vst.msk [vmem:[%s243 + $0xa0] sm:$0xff] %vm1912, %v1900
        %1934 = vst.msk [vmem:[%s243 + $0xa8] sm:$0xff] %vm1912, %v1901
        %1935 = vst.msk [vmem:[%s243 + $0xb0] sm:$0xff] %vm1912, %v1902
        %1936 = vst.msk [vmem:[%s243 + $0xb8] sm:$0xff] %vm1912, %v1903
        %1937 = vst.msk [vmem:[%s243 + $0xc0] sm:$0xff] %vm1912, %v1904
        %1938 = vst.msk [vmem:[%s243 + $0xc8] sm:$0xff] %vm1912, %v1905
        %1939 = vst.msk [vmem:[%s243 + $0xd0] sm:$0xff] %vm1912, %v1906
        %1940 = vst.msk [vmem:[%s243 + $0xd8] sm:$0xff] %vm1912, %v1907
        %1941 = vst.msk [vmem:[%s243 + $0xe0] sm:$0xff] %vm1912, %v1908
        %1942 = vst.msk [vmem:[%s243 + $0xe8] sm:$0xff] %vm1912, %v1909
        %1943 = vst.msk [vmem:[%s243 + $0xf0] sm:$0xff] %vm1912, %v1910
        %1944 = vst.msk [vmem:[%s243 + $0xf8] sm:$0xff] %vm1912, %v1911
        %s1945 = sand.u32 %s125, 1
        %s1946 = scalar_lea.sflag [#allocation4], %s1945
        %s1947 = sand.u32 %s125, 1
        %s1948 = smul.addr %s1947, 256
        %s1949 = scalar_lea.vmem [#allocation9], %s1948
        // Predicated region
        $region45: #{tpu_custom_call.1} parent=31 // pred_check
          %p1950 = pneg %p135
        $region46: #{tpu_custom_call.1} parent=31 // pred_check_branch
          %1952 = sbr.rel (%p1950) target = $region48
        $region47: #{tpu_custom_call.1} parent=31 // pred_region
          %s1953 = smul.u32 8, %s28
          %s1955 = ssub.s32 4096, 4096
          %1956 = vsyncadd %s1946, %s1955
          %s1957 = sadd.s32 %s29, %s1953
          %s1958 = smul.addr %s27, 32
          %s1959 = sadd.s32 %s1957, %s1958
          %s1960 = smul.addr %s1959, 128
          %s1961 = scalar_lea.hbm %s3, %s1960
          %s1962 = sshll.u32 %s1949, 4
          %s1963 = int_to_ptr.vmem [resolvable:$true] %s1962
          %1968 = dma.vmem_to_hbm [thread:$0]  %s1963, 4096, %s1961, %s1946, 128, 128, 8
        $region48: #{tpu_custom_call.1} parent=31 // pred_fallthru
          _
      $region32: #{tpu_custom_call.1} parent=5 // pred_fallthru
        _
      %p1969 = scmp.le.s32.totalorder 2, %s17
      // Predicated region
      $region49: #{tpu_custom_call.1} parent=5 // pred_check
        %p1970 = pneg %p1969
      $region50: #{tpu_custom_call.1} parent=5 // pred_check_branch
        %1972 = sbr.rel (%p1970) target = $region52
      $region51: #{tpu_custom_call.1} parent=5 // pred_region
        %s1973 = ssub.s32 %s17, 2
        // Predicated region
        $region53: #{tpu_custom_call.1} parent=51 // pred_check
          %p1974 = pneg %p141
        $region54: #{tpu_custom_call.1} parent=51 // pred_check_branch
          %1976 = sbr.rel (%p1974) target = $region56
        $region55: #{tpu_custom_call.1} parent=51 // pred_region
          %s1977 = sand.u32 %s126, 1
          %s1978 = scalar_lea.sflag [#allocation4], %s1977
          %s1979 = sand.u32 %s126, 1
          %s1980 = smul.addr %s1979, 256
          %s1981 = scalar_lea.vmem [#allocation9], %s1980
          %1982 = dma.done %s1978, 4096
        $region56: #{tpu_custom_call.1} parent=51 // pred_fallthru
          _
      $region52: #{tpu_custom_call.1} parent=5 // pred_fallthru
        _
    $region6: #{tpu_custom_call.1} parent=1 // loop_footer
      %s21 = sadd.s32 1, %s17
    $region7: #{tpu_custom_call.1} parent=1 // loop_footer_branch
      %16 = sbr.rel target = $region3
    $region8: #{tpu_custom_call.1} parent=1 // loop_exit
      _
    %1983 = vsyncpa [#allocation3], 1
    %s1984 = scalar_lea.sflag [#allocation3], 1
    %1985 = vsyncpa %s1984, 1
    %1986 = vsyncpa [#allocation4], 1
    %s1987 = scalar_lea.sflag [#allocation4], 1
    %1988 = vsyncpa %s1987, 1
    %1989 = vsyncpa [#allocation5], 1
    %s1990 = scalar_lea.sflag [#allocation5], 1
    %1991 = vsyncpa %s1990, 1
    %1992 = vsyncpa [#allocation6], 1
    %s1993 = scalar_lea.sflag [#allocation6], 1
    %1994 = vsyncpa %s1993, 1

</llo_original>
